<compile_context>
chip_gen: v6e
topology: v6e:2x2x1
jax: 0.10.0
libtpu: 0.0.40
codegen_flags: <defaults>
</compile_context>

<pallas_src>
import functools
import math

import jax
import jax.numpy as jnp
import numpy as np
from jax import lax
from jax.experimental import pallas as pl
from jax.experimental.pallas import tpu as pltpu

LN_EPS = 1e-5
FFN_CHUNK = 512  # hidden-dim chunk for the FFN (bounds the f32 h1 intermediate)


def _layernorm(y, gamma, beta):
    mu = jnp.mean(y, axis=-1, keepdims=True)
    var = jnp.mean((y - mu) ** 2, axis=-1, keepdims=True)
    return (y - mu) * lax.rsqrt(var + LN_EPS) * gamma + beta


def _gelu_exact(x):
    # nn.GELU() default: exact erf formulation (matches PyTorch numerics).
    return 0.5 * x * (1.0 + lax.erf(x * 0.7071067811865476))


def attention_block_kernel(
    x_ref,
    wqkv_ref, bqkv_ref,
    wo_ref, bo_ref,
    g1_ref, be1_ref,
    w1_ref, b1_ref, w2_ref, b2_ref,
    g2_ref, be2_ref,
    o_ref,
    *, num_heads: int, block_batch: int, seq_len: int,
):
    H, S, Bt = num_heads, seq_len, block_batch
    bf16 = jnp.bfloat16

    xf = x_ref[...].astype(jnp.float32)            # (Bt*S, E) f32 for residual/LN
    E = xf.shape[-1]
    D = E // H

    # --- fused QKV projection: one full-width matmul on the slab -------------
    # (1/sqrt(D) softmax scale is pre-folded into the wq / bq columns.)
    qkv = jnp.dot(xf.astype(bf16), wqkv_ref[...],
                  preferred_element_type=jnp.float32) + bqkv_ref[...]   # (Bt*S, 3E)

    # --- per-batch-row, head-batched score / softmax / PV --------------------
    ctx_rows = []
    for b in range(Bt):                            # static unroll; slices are free
        r0 = b * S
        q_b = qkv[r0:r0 + S, 0:E]                  # (S, E)
        k_b = qkv[r0:r0 + S, E:2 * E]
        v_b = qkv[r0:r0 + S, 2 * E:3 * E]

        # head split: (H, S, D) stacks (lane slices stacked on a new major axis)
        qh = jnp.stack([q_b[:, h * D:(h + 1) * D] for h in range(H)], 0).astype(bf16)
        kh = jnp.stack([k_b[:, h * D:(h + 1) * D] for h in range(H)], 0).astype(bf16)
        vh = jnp.stack([v_b[:, h * D:(h + 1) * D] for h in range(H)], 0).astype(bf16)

        s = jnp.einsum("hqd,hkd->hqk", qh, kh,
                       preferred_element_type=jnp.float32)              # (H, S, S)
        s = s - jnp.max(s, axis=-1, keepdims=True)
        p = jnp.exp(s)
        p = p * pl.reciprocal(jnp.sum(p, axis=-1, keepdims=True), approx=True)

        o = jnp.einsum("hqk,hkd->hqd", p.astype(bf16), vh,
                       preferred_element_type=jnp.float32)              # (H, S, D)
        # heads back to lanes: (S, H*D) = (S, E)
        ctx_rows.append(jnp.concatenate([o[h] for h in range(H)], axis=-1))

    ctx = ctx_rows[0] if Bt == 1 else jnp.concatenate(ctx_rows, axis=0)  # (Bt*S, E)

    # --- output projection: one full-width matmul on the slab ----------------
    attn_out = jnp.dot(ctx.astype(bf16), wo_ref[...],
                       preferred_element_type=jnp.float32) + bo_ref[...]

    # --- residual + LayerNorm 1 (f32) ----------------------------------------
    y = _layernorm(xf + attn_out, g1_ref[...], be1_ref[...])

    # --- FFN (Linear -> GELU(exact) -> Linear), chunked over hidden dim ------
    # Dropout is identity in eval mode.
    F = w1_ref.shape[-1]
    y_bf = y.astype(bf16)
    h2 = jnp.zeros(y.shape, jnp.float32)
    for c0 in range(0, F, FFN_CHUNK):              # static; 1 chunk at small F
        c1 = min(c0 + FFN_CHUNK, F)
        h1 = jnp.dot(y_bf, w1_ref[:, c0:c1],
                     preferred_element_type=jnp.float32) + b1_ref[:, c0:c1]
        h1 = _gelu_exact(h1)
        h2 = h2 + jnp.dot(h1.astype(bf16), w2_ref[c0:c1, :],
                          preferred_element_type=jnp.float32)
    h2 = h2 + b2_ref[...]

    # --- residual + LayerNorm 2 ----------------------------------------------
    z = _layernorm(y + h2, g2_ref[...], be2_ref[...])

    o_ref[...] = z.astype(o_ref.dtype)


def attention_block(x, params, *, num_heads: int, block_batch=None):
    B, S, E = x.shape
    H = num_heads
    D = E // H
    if block_batch is None:
        # Grid length >= 2 so both v7x TensorCores get work (parallel axis).
        block_batch = max(1, B // 2)
    assert B % block_batch == 0
    Bt = block_batch

    bf16 = jnp.bfloat16
    scale = 1.0 / math.sqrt(D)

    # Wrapper-side weight prep (plain JAX, done once):
    #   * fuse Q/K/V into (E, 3E), folding the softmax scale into wq / bq
    #   * cast all MXU weights to bf16
    wqkv = jnp.concatenate(
        [params["wq"] * scale, params["wk"], params["wv"]], axis=1).astype(bf16)
    bqkv = jnp.concatenate(
        [params["bq"] * scale, params["bk"], params["bv"]], axis=1)       # (1, 3E) f32

    weights = dict(
        wqkv=wqkv, bqkv=bqkv,
        wo=params["wo"].astype(bf16), bo=params["bo"],
        g1=params["g1"], be1=params["be1"],
        w1=params["w1"].astype(bf16), b1=params["b1"],
        w2=params["w2"].astype(bf16), b2=params["b2"],
        g2=params["g2"], be2=params["be2"],
    )
    order = ["wqkv", "bqkv", "wo", "bo", "g1", "be1",
             "w1", "b1", "w2", "b2", "g2", "be2"]
    wargs = [weights[k] for k in order]

    def full_spec(shape):
        n = len(shape)
        return pl.BlockSpec(shape, lambda b: (0,) * n)

    # Fold batch into the matmul M dim: present x (and the output) as a
    # (B*S, E) slab; each grid step takes Bt*S rows.
    x2 = x.reshape(B * S, E)

    in_specs = [pl.BlockSpec((Bt * S, E), lambda b: (b, 0))]
    in_specs += [full_spec(tuple(w.shape)) for w in wargs]

    kernel = functools.partial(attention_block_kernel, num_heads=H,
                               block_batch=Bt, seq_len=S)

    out = pl.pallas_call(
        kernel,
        out_shape=jax.ShapeDtypeStruct((B * S, E), x.dtype),
        grid_spec=pltpu.PrefetchScalarGridSpec(
            num_scalar_prefetch=0,
            grid=(B // Bt,),
            in_specs=in_specs,
            out_specs=pl.BlockSpec((Bt * S, E), lambda b: (b, 0)),
        ),
        compiler_params=pltpu.CompilerParams(
            dimension_semantics=("parallel",),
            vmem_limit_bytes=48 << 20,   # safe on v7x (64 MiB physical VMEM/TC)
        ),
    )(x2, *wargs)
    return out.reshape(B, S, E)


def reference_block(x, params, *, num_heads: int):
    """Pure-JAX (f32) reference mirroring nn.MultiheadAttention + LN + FFN (eval)."""
    B, S, E = x.shape
    D = E // num_heads
    scale = 1.0 / math.sqrt(D)

    q = x @ params["wq"] + params["bq"]
    k = x @ params["wk"] + params["bk"]
    v = x @ params["wv"] + params["bv"]

    def split(t):  # (B,S,E) -> (B,H,S,D)
        return t.reshape(B, S, num_heads, D).transpose(0, 2, 1, 3)

    qh, kh, vh = split(q), split(k), split(v)
    s = jnp.einsum("bhqd,bhkd->bhqk", qh, kh) * scale
    p = jax.nn.softmax(s, axis=-1)
    o = jnp.einsum("bhqk,bhkd->bhqd", p, vh)
    attn = o.transpose(0, 2, 1, 3).reshape(B, S, E)
    attn_out = attn @ params["wo"] + params["bo"]

    def ln(y, g, b):
        mu = jnp.mean(y, axis=-1, keepdims=True)
        var = jnp.mean((y - mu) ** 2, axis=-1, keepdims=True)
        return (y - mu) * lax.rsqrt(var + LN_EPS) * g + b

    y = ln(x + attn_out, params["g1"], params["be1"])
    h1 = jax.nn.gelu(y @ params["w1"] + params["b1"], approximate=False)
    h2 = h1 @ params["w2"] + params["b2"]
    return ln(y + h2, params["g2"], params["be2"])


def init_params(key, embed_dim: int):
    E = embed_dim
    ks = jax.random.split(key, 8)
    scale = 0.02
    # Weights stored pre-transposed for right-multiplication: y = x @ W + b.
    return {
        "wq": scale * jax.random.normal(ks[0], (E, E), jnp.float32),
        "wk": scale * jax.random.normal(ks[1], (E, E), jnp.float32),
        "wv": scale * jax.random.normal(ks[2], (E, E), jnp.float32),
        "bq": jnp.zeros((1, E), jnp.float32),
        "bk": jnp.zeros((1, E), jnp.float32),
        "bv": jnp.zeros((1, E), jnp.float32),
        "wo": scale * jax.random.normal(ks[3], (E, E), jnp.float32),
        "bo": 0.01 * jnp.ones((1, E), jnp.float32),
        "g1": jnp.ones((1, E), jnp.float32),
        "be1": jnp.zeros((1, E), jnp.float32),
        "w1": scale * jax.random.normal(ks[4], (E, 4 * E), jnp.float32),
        "b1": 0.01 * jnp.ones((1, 4 * E), jnp.float32),
        "w2": scale * jax.random.normal(ks[5], (4 * E, E), jnp.float32),
        "b2": 0.01 * jnp.ones((1, E), jnp.float32),
        "g2": jnp.ones((1, E), jnp.float32),
        "be2": jnp.zeros((1, E), jnp.float32),
    }


if __name__ == "__main__":
    B, S, E, H = 2, 8, 32, 8   # embed_dim=32, num_heads=8 -> head_dim=4

    key = jax.random.PRNGKey(0)
    kx, kp = jax.random.split(key)
    x = jax.random.normal(kx, (B, S, E), jnp.float32)
    params = init_params(kp, E)

    out = attention_block(x, params, num_heads=H)
    out = jax.block_until_ready(out)

    ref = reference_block(x, params, num_heads=H)
    # Tolerance loosened vs. pure f32: MXU operands are fed in bf16 and the
    # softmax denominator uses the approximate EUP reciprocal (eval-mode).
    np.testing.assert_allclose(np.asarray(out), np.asarray(ref), rtol=3e-2, atol=3e-2)

    print("KERNEL_OK")
</pallas_src>

<mosaic_0001>
module attributes {stable_mosaic.version = 11 : i64} {
  func.func @attention_block_kernel(%arg0: i32, %arg1: memref<8x32xf32, #tpu.memory_space<vmem>>, %arg2: memref<32x96xbf16, #tpu.memory_space<vmem>>, %arg3: memref<1x96xf32, #tpu.memory_space<vmem>>, %arg4: memref<32x32xbf16, #tpu.memory_space<vmem>>, %arg5: memref<1x32xf32, #tpu.memory_space<vmem>>, %arg6: memref<1x32xf32, #tpu.memory_space<vmem>>, %arg7: memref<1x32xf32, #tpu.memory_space<vmem>>, %arg8: memref<32x128xbf16, #tpu.memory_space<vmem>>, %arg9: memref<1x128xf32, #tpu.memory_space<vmem>>, %arg10: memref<128x32xbf16, #tpu.memory_space<vmem>>, %arg11: memref<1x32xf32, #tpu.memory_space<vmem>>, %arg12: memref<1x32xf32, #tpu.memory_space<vmem>>, %arg13: memref<1x32xf32, #tpu.memory_space<vmem>>, %arg14: memref<8x32xf32, #tpu.memory_space<vmem>>) attributes {dimension_semantics = [#tpu.dimension_semantics<parallel>], iteration_bounds = array<i64: 2>, scalar_prefetch = 0 : i64, scratch_operands = 0 : i64, tpu.core_type = #tpu.core_type<tc>, window_params = [{transform_indices = @transform_0, window_bounds = array<i64: 8, 32>}, {pipeline_mode = #tpu.pipeline_mode<synchronous>, transform_indices = @transform_1, window_bounds = array<i64: 32, 96>}, {pipeline_mode = #tpu.pipeline_mode<synchronous>, transform_indices = @transform_2, window_bounds = array<i64: 1, 96>}, {pipeline_mode = #tpu.pipeline_mode<synchronous>, transform_indices = @transform_3, window_bounds = array<i64: 32, 32>}, {pipeline_mode = #tpu.pipeline_mode<synchronous>, transform_indices = @transform_4, window_bounds = array<i64: 1, 32>}, {pipeline_mode = #tpu.pipeline_mode<synchronous>, transform_indices = @transform_5, window_bounds = array<i64: 1, 32>}, {pipeline_mode = #tpu.pipeline_mode<synchronous>, transform_indices = @transform_6, window_bounds = array<i64: 1, 32>}, {pipeline_mode = #tpu.pipeline_mode<synchronous>, transform_indices = @transform_7, window_bounds = array<i64: 32, 128>}, {pipeline_mode = #tpu.pipeline_mode<synchronous>, transform_indices = @transform_8, window_bounds = array<i64: 1, 128>}, {pipeline_mode = #tpu.pipeline_mode<synchronous>, transform_indices = @transform_9, window_bounds = array<i64: 128, 32>}, {pipeline_mode = #tpu.pipeline_mode<synchronous>, transform_indices = @transform_10, window_bounds = array<i64: 1, 32>}, {pipeline_mode = #tpu.pipeline_mode<synchronous>, transform_indices = @transform_11, window_bounds = array<i64: 1, 32>}, {pipeline_mode = #tpu.pipeline_mode<synchronous>, transform_indices = @transform_12, window_bounds = array<i64: 1, 32>}, {transform_indices = @transform_13, window_bounds = array<i64: 8, 32>}]} {
    %c0 = arith.constant 0 : index
    %c0_0 = arith.constant 0 : index
    %0 = vector.load %arg1[%c0, %c0_0] : memref<8x32xf32, #tpu.memory_space<vmem>>, vector<8x32xf32>
    %1 = arith.truncf %0 : vector<8x32xf32> to vector<8x32xbf16>
    %c0_1 = arith.constant 0 : index
    %c0_2 = arith.constant 0 : index
    %2 = vector.load %arg2[%c0_1, %c0_2] : memref<32x96xbf16, #tpu.memory_space<vmem>>, vector<32x96xbf16>
    %cst = arith.constant dense<0.000000e+00> : vector<8x96xf32>
    %3 = tpu.matmul %1, %2, %cst {dimension_numbers = #tpu.dot_dimension_numbers<[1], [0], [0], [1], [0, 0, 1, 1], [], []>} : vector<8x32xbf16>, vector<32x96xbf16>, vector<8x96xf32> -> vector<8x96xf32>
    %c0_3 = arith.constant 0 : index
    %c0_4 = arith.constant 0 : index
    %4 = vector.load %arg3[%c0_3, %c0_4] : memref<1x96xf32, #tpu.memory_space<vmem>>, vector<1x96xf32>
    %5 = vector.broadcast %4 : vector<1x96xf32> to vector<8x96xf32>
    %6 = arith.addf %3, %5 : vector<8x96xf32>
    %7 = vector.extract_strided_slice %6 {offsets = [0, 0], sizes = [8, 32], strides = [1, 1]} : vector<8x96xf32> to vector<8x32xf32>
    %8 = vector.extract_strided_slice %6 {offsets = [0, 32], sizes = [8, 32], strides = [1, 1]} : vector<8x96xf32> to vector<8x32xf32>
    %9 = vector.extract_strided_slice %6 {offsets = [0, 64], sizes = [8, 32], strides = [1, 1]} : vector<8x96xf32> to vector<8x32xf32>
    %10 = vector.extract_strided_slice %7 {offsets = [0, 0], sizes = [8, 4], strides = [1, 1]} : vector<8x32xf32> to vector<8x4xf32>
    %11 = vector.extract_strided_slice %7 {offsets = [0, 4], sizes = [8, 4], strides = [1, 1]} : vector<8x32xf32> to vector<8x4xf32>
    %12 = vector.extract_strided_slice %7 {offsets = [0, 8], sizes = [8, 4], strides = [1, 1]} : vector<8x32xf32> to vector<8x4xf32>
    %13 = vector.extract_strided_slice %7 {offsets = [0, 12], sizes = [8, 4], strides = [1, 1]} : vector<8x32xf32> to vector<8x4xf32>
    %14 = vector.extract_strided_slice %7 {offsets = [0, 16], sizes = [8, 4], strides = [1, 1]} : vector<8x32xf32> to vector<8x4xf32>
    %15 = vector.extract_strided_slice %7 {offsets = [0, 20], sizes = [8, 4], strides = [1, 1]} : vector<8x32xf32> to vector<8x4xf32>
    %16 = vector.extract_strided_slice %7 {offsets = [0, 24], sizes = [8, 4], strides = [1, 1]} : vector<8x32xf32> to vector<8x4xf32>
    %17 = vector.extract_strided_slice %7 {offsets = [0, 28], sizes = [8, 4], strides = [1, 1]} : vector<8x32xf32> to vector<8x4xf32>
    %18 = vector.shape_cast %10 : vector<8x4xf32> to vector<1x8x4xf32>
    %19 = vector.shape_cast %11 : vector<8x4xf32> to vector<1x8x4xf32>
    %20 = vector.shape_cast %12 : vector<8x4xf32> to vector<1x8x4xf32>
    %21 = vector.shape_cast %13 : vector<8x4xf32> to vector<1x8x4xf32>
    %22 = vector.shape_cast %14 : vector<8x4xf32> to vector<1x8x4xf32>
    %23 = vector.shape_cast %15 : vector<8x4xf32> to vector<1x8x4xf32>
    %24 = vector.shape_cast %16 : vector<8x4xf32> to vector<1x8x4xf32>
    %25 = vector.shape_cast %17 : vector<8x4xf32> to vector<1x8x4xf32>
    %26 = tpu.concatenate %18, %19, %20, %21, %22, %23, %24, %25 in 0 : vector<1x8x4xf32>, vector<1x8x4xf32>, vector<1x8x4xf32>, vector<1x8x4xf32>, vector<1x8x4xf32>, vector<1x8x4xf32>, vector<1x8x4xf32>, vector<1x8x4xf32> -> vector<8x8x4xf32>
    %27 = arith.truncf %26 : vector<8x8x4xf32> to vector<8x8x4xbf16>
    %28 = vector.extract_strided_slice %8 {offsets = [0, 0], sizes = [8, 4], strides = [1, 1]} : vector<8x32xf32> to vector<8x4xf32>
    %29 = vector.extract_strided_slice %8 {offsets = [0, 4], sizes = [8, 4], strides = [1, 1]} : vector<8x32xf32> to vector<8x4xf32>
    %30 = vector.extract_strided_slice %8 {offsets = [0, 8], sizes = [8, 4], strides = [1, 1]} : vector<8x32xf32> to vector<8x4xf32>
    %31 = vector.extract_strided_slice %8 {offsets = [0, 12], sizes = [8, 4], strides = [1, 1]} : vector<8x32xf32> to vector<8x4xf32>
    %32 = vector.extract_strided_slice %8 {offsets = [0, 16], sizes = [8, 4], strides = [1, 1]} : vector<8x32xf32> to vector<8x4xf32>
    %33 = vector.extract_strided_slice %8 {offsets = [0, 20], sizes = [8, 4], strides = [1, 1]} : vector<8x32xf32> to vector<8x4xf32>
    %34 = vector.extract_strided_slice %8 {offsets = [0, 24], sizes = [8, 4], strides = [1, 1]} : vector<8x32xf32> to vector<8x4xf32>
    %35 = vector.extract_strided_slice %8 {offsets = [0, 28], sizes = [8, 4], strides = [1, 1]} : vector<8x32xf32> to vector<8x4xf32>
    %36 = vector.shape_cast %28 : vector<8x4xf32> to vector<1x8x4xf32>
    %37 = vector.shape_cast %29 : vector<8x4xf32> to vector<1x8x4xf32>
    %38 = vector.shape_cast %30 : vector<8x4xf32> to vector<1x8x4xf32>
    %39 = vector.shape_cast %31 : vector<8x4xf32> to vector<1x8x4xf32>
    %40 = vector.shape_cast %32 : vector<8x4xf32> to vector<1x8x4xf32>
    %41 = vector.shape_cast %33 : vector<8x4xf32> to vector<1x8x4xf32>
    %42 = vector.shape_cast %34 : vector<8x4xf32> to vector<1x8x4xf32>
    %43 = vector.shape_cast %35 : vector<8x4xf32> to vector<1x8x4xf32>
    %44 = tpu.concatenate %36, %37, %38, %39, %40, %41, %42, %43 in 0 : vector<1x8x4xf32>, vector<1x8x4xf32>, vector<1x8x4xf32>, vector<1x8x4xf32>, vector<1x8x4xf32>, vector<1x8x4xf32>, vector<1x8x4xf32>, vector<1x8x4xf32> -> vector<8x8x4xf32>
    %45 = arith.truncf %44 : vector<8x8x4xf32> to vector<8x8x4xbf16>
    %46 = vector.extract_strided_slice %9 {offsets = [0, 0], sizes = [8, 4], strides = [1, 1]} : vector<8x32xf32> to vector<8x4xf32>
    %47 = vector.extract_strided_slice %9 {offsets = [0, 4], sizes = [8, 4], strides = [1, 1]} : vector<8x32xf32> to vector<8x4xf32>
    %48 = vector.extract_strided_slice %9 {offsets = [0, 8], sizes = [8, 4], strides = [1, 1]} : vector<8x32xf32> to vector<8x4xf32>
    %49 = vector.extract_strided_slice %9 {offsets = [0, 12], sizes = [8, 4], strides = [1, 1]} : vector<8x32xf32> to vector<8x4xf32>
    %50 = vector.extract_strided_slice %9 {offsets = [0, 16], sizes = [8, 4], strides = [1, 1]} : vector<8x32xf32> to vector<8x4xf32>
    %51 = vector.extract_strided_slice %9 {offsets = [0, 20], sizes = [8, 4], strides = [1, 1]} : vector<8x32xf32> to vector<8x4xf32>
    %52 = vector.extract_strided_slice %9 {offsets = [0, 24], sizes = [8, 4], strides = [1, 1]} : vector<8x32xf32> to vector<8x4xf32>
    %53 = vector.extract_strided_slice %9 {offsets = [0, 28], sizes = [8, 4], strides = [1, 1]} : vector<8x32xf32> to vector<8x4xf32>
    %54 = vector.shape_cast %46 : vector<8x4xf32> to vector<1x8x4xf32>
    %55 = vector.shape_cast %47 : vector<8x4xf32> to vector<1x8x4xf32>
    %56 = vector.shape_cast %48 : vector<8x4xf32> to vector<1x8x4xf32>
    %57 = vector.shape_cast %49 : vector<8x4xf32> to vector<1x8x4xf32>
    %58 = vector.shape_cast %50 : vector<8x4xf32> to vector<1x8x4xf32>
    %59 = vector.shape_cast %51 : vector<8x4xf32> to vector<1x8x4xf32>
    %60 = vector.shape_cast %52 : vector<8x4xf32> to vector<1x8x4xf32>
    %61 = vector.shape_cast %53 : vector<8x4xf32> to vector<1x8x4xf32>
    %62 = tpu.concatenate %54, %55, %56, %57, %58, %59, %60, %61 in 0 : vector<1x8x4xf32>, vector<1x8x4xf32>, vector<1x8x4xf32>, vector<1x8x4xf32>, vector<1x8x4xf32>, vector<1x8x4xf32>, vector<1x8x4xf32>, vector<1x8x4xf32> -> vector<8x8x4xf32>
    %63 = arith.truncf %62 : vector<8x8x4xf32> to vector<8x8x4xbf16>
    "tpu.trace_start"() <{level = 10 : i32, message = "hqd,hkd->hqk"}> : () -> ()
    %cst_5 = arith.constant dense<0.000000e+00> : vector<8x8x8xf32>
    %64 = tpu.matmul %27, %45, %cst_5 {dimension_numbers = #tpu.dot_dimension_numbers<[2], [2], [1], [1], [0, 0, 0, 1, 1, 1], [0], [0]>} : vector<8x8x4xbf16>, vector<8x8x4xbf16>, vector<8x8x8xf32> -> vector<8x8x8xf32>
    "tpu.trace_stop"() : () -> ()
    %cst_6 = arith.constant dense<0xFF800000> : vector<8x8xf32>
    %65 = vector.multi_reduction <maximumf>, %64, %cst_6 [2] : vector<8x8x8xf32> to vector<8x8xf32>
    %66 = vector.shape_cast %65 : vector<8x8xf32> to vector<8x8x1xf32>
    %67 = vector.broadcast %66 : vector<8x8x1xf32> to vector<8x8x8xf32>
    %68 = arith.subf %64, %67 : vector<8x8x8xf32>
    %69 = math.exp %68 : vector<8x8x8xf32>
    %cst_7 = arith.constant dense<0.000000e+00> : vector<8x8xf32>
    %70 = vector.multi_reduction <add>, %69, %cst_7 [2] : vector<8x8x8xf32> to vector<8x8xf32>
    %71 = vector.shape_cast %70 : vector<8x8xf32> to vector<8x8x1xf32>
    %72 = tpu.reciprocal %71 {approx = true} : vector<8x8x1xf32> -> vector<8x8x1xf32>
    %73 = vector.broadcast %72 : vector<8x8x1xf32> to vector<8x8x8xf32>
    %74 = arith.mulf %69, %73 : vector<8x8x8xf32>
    %75 = arith.truncf %74 : vector<8x8x8xf32> to vector<8x8x8xbf16>
    "tpu.trace_start"() <{level = 10 : i32, message = "hqk,hkd->hqd"}> : () -> ()
    %cst_8 = arith.constant dense<0.000000e+00> : vector<8x8x4xf32>
    %76 = tpu.matmul %75, %63, %cst_8 {dimension_numbers = #tpu.dot_dimension_numbers<[2], [1], [1], [2], [0, 0, 0, 1, 1, 2], [0], [0]>} : vector<8x8x8xbf16>, vector<8x8x4xbf16>, vector<8x8x4xf32> -> vector<8x8x4xf32>
    "tpu.trace_stop"() : () -> ()
    %77 = vector.extract_strided_slice %76 {offsets = [0, 0, 0], sizes = [1, 8, 4], strides = [1, 1, 1]} : vector<8x8x4xf32> to vector<1x8x4xf32>
    %78 = vector.shape_cast %77 : vector<1x8x4xf32> to vector<8x4xf32>
    %79 = vector.extract_strided_slice %76 {offsets = [1, 0, 0], sizes = [1, 8, 4], strides = [1, 1, 1]} : vector<8x8x4xf32> to vector<1x8x4xf32>
    %80 = vector.shape_cast %79 : vector<1x8x4xf32> to vector<8x4xf32>
    %81 = vector.extract_strided_slice %76 {offsets = [2, 0, 0], sizes = [1, 8, 4], strides = [1, 1, 1]} : vector<8x8x4xf32> to vector<1x8x4xf32>
    %82 = vector.shape_cast %81 : vector<1x8x4xf32> to vector<8x4xf32>
    %83 = vector.extract_strided_slice %76 {offsets = [3, 0, 0], sizes = [1, 8, 4], strides = [1, 1, 1]} : vector<8x8x4xf32> to vector<1x8x4xf32>
    %84 = vector.shape_cast %83 : vector<1x8x4xf32> to vector<8x4xf32>
    %85 = vector.extract_strided_slice %76 {offsets = [4, 0, 0], sizes = [1, 8, 4], strides = [1, 1, 1]} : vector<8x8x4xf32> to vector<1x8x4xf32>
    %86 = vector.shape_cast %85 : vector<1x8x4xf32> to vector<8x4xf32>
    %87 = vector.extract_strided_slice %76 {offsets = [5, 0, 0], sizes = [1, 8, 4], strides = [1, 1, 1]} : vector<8x8x4xf32> to vector<1x8x4xf32>
    %88 = vector.shape_cast %87 : vector<1x8x4xf32> to vector<8x4xf32>
    %89 = vector.extract_strided_slice %76 {offsets = [6, 0, 0], sizes = [1, 8, 4], strides = [1, 1, 1]} : vector<8x8x4xf32> to vector<1x8x4xf32>
    %90 = vector.shape_cast %89 : vector<1x8x4xf32> to vector<8x4xf32>
    %91 = vector.extract_strided_slice %76 {offsets = [7, 0, 0], sizes = [1, 8, 4], strides = [1, 1, 1]} : vector<8x8x4xf32> to vector<1x8x4xf32>
    %92 = vector.shape_cast %91 : vector<1x8x4xf32> to vector<8x4xf32>
    %93 = tpu.concatenate %78, %80, %82, %84, %86, %88, %90, %92 in 1 : vector<8x4xf32>, vector<8x4xf32>, vector<8x4xf32>, vector<8x4xf32>, vector<8x4xf32>, vector<8x4xf32>, vector<8x4xf32>, vector<8x4xf32> -> vector<8x32xf32>
    %94 = arith.truncf %93 : vector<8x32xf32> to vector<8x32xbf16>
    %c0_9 = arith.constant 0 : index
    %c0_10 = arith.constant 0 : index
    %95 = vector.load %arg4[%c0_9, %c0_10] : memref<32x32xbf16, #tpu.memory_space<vmem>>, vector<32x32xbf16>
    %cst_11 = arith.constant dense<0.000000e+00> : vector<8x32xf32>
    %96 = tpu.matmul %94, %95, %cst_11 {dimension_numbers = #tpu.dot_dimension_numbers<[1], [0], [0], [1], [0, 0, 1, 1], [], []>} : vector<8x32xbf16>, vector<32x32xbf16>, vector<8x32xf32> -> vector<8x32xf32>
    %c0_12 = arith.constant 0 : index
    %c0_13 = arith.constant 0 : index
    %97 = vector.load %arg5[%c0_12, %c0_13] : memref<1x32xf32, #tpu.memory_space<vmem>>, vector<1x32xf32>
    %98 = vector.broadcast %97 : vector<1x32xf32> to vector<8x32xf32>
    %99 = arith.addf %96, %98 : vector<8x32xf32>
    %100 = arith.addf %0, %99 : vector<8x32xf32>
    %c0_14 = arith.constant 0 : index
    %c0_15 = arith.constant 0 : index
    %101 = vector.load %arg6[%c0_14, %c0_15] : memref<1x32xf32, #tpu.memory_space<vmem>>, vector<1x32xf32>
    %c0_16 = arith.constant 0 : index
    %c0_17 = arith.constant 0 : index
    %102 = vector.load %arg7[%c0_16, %c0_17] : memref<1x32xf32, #tpu.memory_space<vmem>>, vector<1x32xf32>
    %cst_18 = arith.constant dense<0.000000e+00> : vector<8xf32>
    %103 = vector.multi_reduction <add>, %100, %cst_18 [1] : vector<8x32xf32> to vector<8xf32>
    %104 = vector.shape_cast %103 : vector<8xf32> to vector<8x1xf32>
    %cst_19 = arith.constant 3.200000e+01 : f32
    %105 = vector.broadcast %cst_19 : f32 to vector<8x1xf32>
    %106 = arith.divf %104, %105 : vector<8x1xf32>
    %107 = vector.broadcast %106 : vector<8x1xf32> to vector<8x32xf32>
    %108 = arith.subf %100, %107 : vector<8x32xf32>
    %109 = arith.mulf %108, %108 : vector<8x32xf32>
    %cst_20 = arith.constant dense<0.000000e+00> : vector<8xf32>
    %110 = vector.multi_reduction <add>, %109, %cst_20 [1] : vector<8x32xf32> to vector<8xf32>
    %111 = vector.shape_cast %110 : vector<8xf32> to vector<8x1xf32>
    %cst_21 = arith.constant 3.200000e+01 : f32
    %112 = vector.broadcast %cst_21 : f32 to vector<8x1xf32>
    %113 = arith.divf %111, %112 : vector<8x1xf32>
    %114 = vector.broadcast %106 : vector<8x1xf32> to vector<8x32xf32>
    %115 = arith.subf %100, %114 : vector<8x32xf32>
    %cst_22 = arith.constant 9.99999974E-6 : f32
    %116 = vector.broadcast %cst_22 : f32 to vector<8x1xf32>
    %117 = arith.addf %113, %116 : vector<8x1xf32>
    %118 = math.rsqrt %117 : vector<8x1xf32>
    %119 = vector.broadcast %118 : vector<8x1xf32> to vector<8x32xf32>
    %120 = arith.mulf %115, %119 : vector<8x32xf32>
    %121 = vector.broadcast %101 : vector<1x32xf32> to vector<8x32xf32>
    %122 = arith.mulf %120, %121 : vector<8x32xf32>
    %123 = vector.broadcast %102 : vector<1x32xf32> to vector<8x32xf32>
    %124 = arith.addf %122, %123 : vector<8x32xf32>
    %125 = arith.truncf %124 : vector<8x32xf32> to vector<8x32xbf16>
    %cst_23 = arith.constant 0.000000e+00 : f32
    %126 = vector.broadcast %cst_23 : f32 to vector<8x32xf32>
    %c0_24 = arith.constant 0 : index
    %c0_25 = arith.constant 0 : index
    %127 = vector.load %arg8[%c0_24, %c0_25] : memref<32x128xbf16, #tpu.memory_space<vmem>>, vector<32x128xbf16>
    %cst_26 = arith.constant dense<0.000000e+00> : vector<8x128xf32>
    %128 = tpu.matmul %125, %127, %cst_26 {dimension_numbers = #tpu.dot_dimension_numbers<[1], [0], [0], [1], [0, 0, 1, 1], [], []>} : vector<8x32xbf16>, vector<32x128xbf16>, vector<8x128xf32> -> vector<8x128xf32>
    %c0_27 = arith.constant 0 : index
    %c0_28 = arith.constant 0 : index
    %129 = vector.load %arg9[%c0_27, %c0_28] : memref<1x128xf32, #tpu.memory_space<vmem>>, vector<1x128xf32>
    %130 = vector.broadcast %129 : vector<1x128xf32> to vector<8x128xf32>
    %131 = arith.addf %128, %130 : vector<8x128xf32>
    %cst_29 = arith.constant 5.000000e-01 : f32
    %132 = vector.broadcast %cst_29 : f32 to vector<8x128xf32>
    %133 = arith.mulf %132, %131 : vector<8x128xf32>
    %cst_30 = arith.constant 0.707106769 : f32
    %134 = vector.broadcast %cst_30 : f32 to vector<8x128xf32>
    %135 = arith.mulf %131, %134 : vector<8x128xf32>
    %136 = math.erf %135 : vector<8x128xf32>
    %cst_31 = arith.constant 1.000000e+00 : f32
    %137 = vector.broadcast %cst_31 : f32 to vector<8x128xf32>
    %138 = arith.addf %137, %136 : vector<8x128xf32>
    %139 = arith.mulf %133, %138 : vector<8x128xf32>
    %140 = arith.truncf %139 : vector<8x128xf32> to vector<8x128xbf16>
    %c0_32 = arith.constant 0 : index
    %c0_33 = arith.constant 0 : index
    %141 = vector.load %arg10[%c0_32, %c0_33] : memref<128x32xbf16, #tpu.memory_space<vmem>>, vector<128x32xbf16>
    %cst_34 = arith.constant dense<0.000000e+00> : vector<8x32xf32>
    %142 = tpu.matmul %140, %141, %cst_34 {dimension_numbers = #tpu.dot_dimension_numbers<[1], [0], [0], [1], [0, 0, 1, 1], [], []>} : vector<8x128xbf16>, vector<128x32xbf16>, vector<8x32xf32> -> vector<8x32xf32>
    %143 = arith.addf %126, %142 : vector<8x32xf32>
    %c0_35 = arith.constant 0 : index
    %c0_36 = arith.constant 0 : index
    %144 = vector.load %arg11[%c0_35, %c0_36] : memref<1x32xf32, #tpu.memory_space<vmem>>, vector<1x32xf32>
    %145 = vector.broadcast %144 : vector<1x32xf32> to vector<8x32xf32>
    %146 = arith.addf %143, %145 : vector<8x32xf32>
    %147 = arith.addf %124, %146 : vector<8x32xf32>
    %c0_37 = arith.constant 0 : index
    %c0_38 = arith.constant 0 : index
    %148 = vector.load %arg12[%c0_37, %c0_38] : memref<1x32xf32, #tpu.memory_space<vmem>>, vector<1x32xf32>
    %c0_39 = arith.constant 0 : index
    %c0_40 = arith.constant 0 : index
    %149 = vector.load %arg13[%c0_39, %c0_40] : memref<1x32xf32, #tpu.memory_space<vmem>>, vector<1x32xf32>
    %cst_41 = arith.constant dense<0.000000e+00> : vector<8xf32>
    %150 = vector.multi_reduction <add>, %147, %cst_41 [1] : vector<8x32xf32> to vector<8xf32>
    %151 = vector.shape_cast %150 : vector<8xf32> to vector<8x1xf32>
    %cst_42 = arith.constant 3.200000e+01 : f32
    %152 = vector.broadcast %cst_42 : f32 to vector<8x1xf32>
    %153 = arith.divf %151, %152 : vector<8x1xf32>
    %154 = vector.broadcast %153 : vector<8x1xf32> to vector<8x32xf32>
    %155 = arith.subf %147, %154 : vector<8x32xf32>
    %156 = arith.mulf %155, %155 : vector<8x32xf32>
    %cst_43 = arith.constant dense<0.000000e+00> : vector<8xf32>
    %157 = vector.multi_reduction <add>, %156, %cst_43 [1] : vector<8x32xf32> to vector<8xf32>
    %158 = vector.shape_cast %157 : vector<8xf32> to vector<8x1xf32>
    %cst_44 = arith.constant 3.200000e+01 : f32
    %159 = vector.broadcast %cst_44 : f32 to vector<8x1xf32>
    %160 = arith.divf %158, %159 : vector<8x1xf32>
    %161 = vector.broadcast %153 : vector<8x1xf32> to vector<8x32xf32>
    %162 = arith.subf %147, %161 : vector<8x32xf32>
    %cst_45 = arith.constant 9.99999974E-6 : f32
    %163 = vector.broadcast %cst_45 : f32 to vector<8x1xf32>
    %164 = arith.addf %160, %163 : vector<8x1xf32>
    %165 = math.rsqrt %164 : vector<8x1xf32>
    %166 = vector.broadcast %165 : vector<8x1xf32> to vector<8x32xf32>
    %167 = arith.mulf %162, %166 : vector<8x32xf32>
    %168 = vector.broadcast %148 : vector<1x32xf32> to vector<8x32xf32>
    %169 = arith.mulf %167, %168 : vector<8x32xf32>
    %170 = vector.broadcast %149 : vector<1x32xf32> to vector<8x32xf32>
    %171 = arith.addf %169, %170 : vector<8x32xf32>
    %c0_46 = arith.constant 0 : index
    %c0_47 = arith.constant 0 : index
    %172 = vector.load %arg14[%c0_46, %c0_47] : memref<8x32xf32, #tpu.memory_space<vmem>>, vector<8x32xf32>
    tpu.vector_store %arg14[%c0_46, %c0_47], %171 {strides = array<i32>} : memref<8x32xf32, #tpu.memory_space<vmem>>, vector<8x32xf32>,
    return
  }
  func.func @transform_0(%arg0: i32) -> (i32, i32) {
    %c0_i32 = arith.constant 0 : i32
    %c0_i32_0 = arith.constant 0 : i32
    return %arg0, %c0_i32 : i32, i32
  }
  func.func @transform_1(%arg0: i32) -> (i32, i32) {
    %c0_i32 = arith.constant 0 : i32
    %c0_i32_0 = arith.constant 0 : i32
    %c0_i32_1 = arith.constant 0 : i32
    return %c0_i32, %c0_i32_0 : i32, i32
  }
  func.func @transform_2(%arg0: i32) -> (i32, i32) {
    %c0_i32 = arith.constant 0 : i32
    %c0_i32_0 = arith.constant 0 : i32
    %c0_i32_1 = arith.constant 0 : i32
    return %c0_i32, %c0_i32_0 : i32, i32
  }
  func.func @transform_3(%arg0: i32) -> (i32, i32) {
    %c0_i32 = arith.constant 0 : i32
    %c0_i32_0 = arith.constant 0 : i32
    %c0_i32_1 = arith.constant 0 : i32
    return %c0_i32, %c0_i32_0 : i32, i32
  }
  func.func @transform_4(%arg0: i32) -> (i32, i32) {
    %c0_i32 = arith.constant 0 : i32
    %c0_i32_0 = arith.constant 0 : i32
    %c0_i32_1 = arith.constant 0 : i32
    return %c0_i32, %c0_i32_0 : i32, i32
  }
  func.func @transform_5(%arg0: i32) -> (i32, i32) {
    %c0_i32 = arith.constant 0 : i32
    %c0_i32_0 = arith.constant 0 : i32
    %c0_i32_1 = arith.constant 0 : i32
    return %c0_i32, %c0_i32_0 : i32, i32
  }
  func.func @transform_6(%arg0: i32) -> (i32, i32) {
    %c0_i32 = arith.constant 0 : i32
    %c0_i32_0 = arith.constant 0 : i32
    %c0_i32_1 = arith.constant 0 : i32
    return %c0_i32, %c0_i32_0 : i32, i32
  }
  func.func @transform_7(%arg0: i32) -> (i32, i32) {
    %c0_i32 = arith.constant 0 : i32
    %c0_i32_0 = arith.constant 0 : i32
    %c0_i32_1 = arith.constant 0 : i32
    return %c0_i32, %c0_i32_0 : i32, i32
  }
  func.func @transform_8(%arg0: i32) -> (i32, i32) {
    %c0_i32 = arith.constant 0 : i32
    %c0_i32_0 = arith.constant 0 : i32
    %c0_i32_1 = arith.constant 0 : i32
    return %c0_i32, %c0_i32_0 : i32, i32
  }
  func.func @transform_9(%arg0: i32) -> (i32, i32) {
    %c0_i32 = arith.constant 0 : i32
    %c0_i32_0 = arith.constant 0 : i32
    %c0_i32_1 = arith.constant 0 : i32
    return %c0_i32, %c0_i32_0 : i32, i32
  }
  func.func @transform_10(%arg0: i32) -> (i32, i32) {
    %c0_i32 = arith.constant 0 : i32
    %c0_i32_0 = arith.constant 0 : i32
    %c0_i32_1 = arith.constant 0 : i32
    return %c0_i32, %c0_i32_0 : i32, i32
  }
  func.func @transform_11(%arg0: i32) -> (i32, i32) {
    %c0_i32 = arith.constant 0 : i32
    %c0_i32_0 = arith.constant 0 : i32
    %c0_i32_1 = arith.constant 0 : i32
    return %c0_i32, %c0_i32_0 : i32, i32
  }
  func.func @transform_12(%arg0: i32) -> (i32, i32) {
    %c0_i32 = arith.constant 0 : i32
    %c0_i32_0 = arith.constant 0 : i32
    %c0_i32_1 = arith.constant 0 : i32
    return %c0_i32, %c0_i32_0 : i32, i32
  }
  func.func @transform_13(%arg0: i32) -> (i32, i32) {
    %c0_i32 = arith.constant 0 : i32
    %c0_i32_0 = arith.constant 0 : i32
    return %arg0, %c0_i32 : i32, i32
  }
}

</mosaic_0001>

<llo_original>
// kernel: tpu_custom_call.1
$region0: #{tpu_custom_call.1}
  #allocation0 [shape = 'u32[]', space=smem, size = 0x4, offset = 0x4, fixed_abs, tag = 'smem constant byte address 0x4 - core index']
  #allocation1 [shape = 'u32[144,128]{1,0:T(1,128)}', space=vmem, size = 0x12000, scoped, tag = 'internal scratch']
  %s0 = inlined_call_operand.vmem [shape: f32[16,32], index: 0, kind: input, shape index: {}]
  %s1 = inlined_call_operand.vmem [shape: bf16[32,96], index: 1, kind: input, shape index: {}]
  %s2 = inlined_call_operand.vmem [shape: f32[1,96], index: 2, kind: input, shape index: {}]
  %s3 = inlined_call_operand.vmem [shape: bf16[32,32], index: 3, kind: input, shape index: {}]
  %s4 = inlined_call_operand.vmem [shape: f32[1,32], index: 4, kind: input, shape index: {}]
  %s5 = inlined_call_operand.vmem [shape: f32[1,32], index: 5, kind: input, shape index: {}]
  %s6 = inlined_call_operand.vmem [shape: f32[1,32], index: 6, kind: input, shape index: {}]
  %s7 = inlined_call_operand.vmem [shape: bf16[32,128], index: 7, kind: input, shape index: {}]
  %s8 = inlined_call_operand.vmem [shape: f32[1,128], index: 8, kind: input, shape index: {}]
  %s9 = inlined_call_operand.vmem [shape: bf16[128,32], index: 9, kind: input, shape index: {}]
  %s10 = inlined_call_operand.vmem [shape: f32[1,32], index: 10, kind: input, shape index: {}]
  %s11 = inlined_call_operand.vmem [shape: f32[1,32], index: 11, kind: input, shape index: {}]
  %s12 = inlined_call_operand.vmem [shape: f32[1,32], index: 12, kind: input, shape index: {}]
  %s13 = inlined_call_operand.hbm [shape: f32[16,32], index: 13, kind: output, shape index: {}]
  %s14 = sld [smem:[#allocation0]]
  $region85: #{tpu_custom_call.1} parent=0
    _
  %s16 = ssub.s32 1, %s14
  %s17 = scalar_select 0, %s16, %s14
  $region1: #{tpu_custom_call.1} parent=0
    #allocation2 [shape = 'u8[8192]{0}', space=vmem, size = 0x2000, scoped, tag = 'output window, operand 0']
    #allocation3 [shape = 's32[2]{0}', space=sflag, size = 0x8, scoped, tag = 'scoped memory for tpu_custom_call.1']
    %18 = vsyncpa [#allocation3], 0
    %s19 = scalar_lea.sflag [#allocation3], 1
    %20 = vsyncpa %s19, 0
    loop: start=0, step=1, limit=4
    $region2: #{tpu_custom_call.1} parent=1 // loop_pre_header
      _
    $region3: #{tpu_custom_call.1} parent=1 // loop_header
      %s22 = sphi 0, %s26
      %p23 = scmp.ge.s32.totalorder %s22, 4
      %s32 = sphi 0, %s34
      %s35 = sphi 0, %s32
      %s36 = sphi 0, %s35
      %s52 = sphi 0, %s36
      %s56 = sphi 0, %s56
      %s58 = sphi 0, %s56
      %s59 = sphi 0, %s58
      %s73 = sphi 0, %s59
      %s77 = sphi 0, %s77
      %s79 = sphi 0, %s77
      %s80 = sphi 0, %s79
      %s94 = sphi 0, %s80
      %s98 = sphi 0, %s98
      %s100 = sphi 0, %s98
      %s101 = sphi 0, %s100
      %s115 = sphi 0, %s101
      %s119 = sphi 0, %s119
      %s121 = sphi 0, %s119
      %s122 = sphi 0, %s121
      %s136 = sphi 0, %s122
      %s140 = sphi 0, %s140
      %s142 = sphi 0, %s140
      %s143 = sphi 0, %s142
      %s157 = sphi 0, %s143
      %s161 = sphi 0, %s161
      %s163 = sphi 0, %s161
      %s164 = sphi 0, %s163
      %s178 = sphi 0, %s164
      %s182 = sphi 0, %s182
      %s184 = sphi 0, %s182
      %s185 = sphi 0, %s184
      %s199 = sphi 0, %s185
      %s203 = sphi 0, %s203
      %s205 = sphi 0, %s203
      %s206 = sphi 0, %s205
      %s220 = sphi 0, %s206
      %s224 = sphi 0, %s224
      %s226 = sphi 0, %s224
      %s227 = sphi 0, %s226
      %s241 = sphi 0, %s227
      %s245 = sphi 0, %s245
      %s247 = sphi 0, %s245
      %s248 = sphi 0, %s247
      %s262 = sphi 0, %s248
      %s266 = sphi 0, %s266
      %s268 = sphi 0, %s266
      %s269 = sphi 0, %s268
      %s283 = sphi 0, %s269
      %s287 = sphi 0, %s287
      %s289 = sphi 0, %s287
      %s290 = sphi 0, %s289
      %s304 = sphi 0, %s290
      %s310 = sphi 0, %s312
      %s313 = sphi 0, %s310
      %s314 = sphi 0, %s313
      %s330 = sphi 0, %s314
    $region4: #{tpu_custom_call.1} parent=1 // loop_header_branch
      %25 = sbr.rel (%p23) target = $region8
    $region5: #{tpu_custom_call.1} parent=1 // loop_body
      %s27 = ssub.s32 %s22, 1
      %s28 = ssub.s32 %s22, 2
      %s29 = sadd.s32 %s22, 1
      %s30 = ssub.s32 %s22, %s29
      %p31 = scmp.eq.s32.totalorder %s30, 0
      %s33 = sadd.s32 %s32, 1
      %s34 = scalar_select %p31, %s32, %s33
      %p37 = pneg %p31
      %p38 = scmp.eq.s32.totalorder %s22, 1
      %p39 = por %p37, %p38
      %p40 = scmp.ne.s32.totalorder %s32, %s35
      %p41 = scmp.eq.s32.totalorder %s22, 0
      %p42 = por %p40, %p41
      %p43 = scmp.ne.s32.totalorder %s32, %s35
      %p44 = scmp.eq.s32.totalorder %s27, 1
      %p45 = por %p43, %p44
      %p46 = scmp.ne.s32.totalorder %s35, %s36
      %p47 = scmp.eq.s32.totalorder %s27, 0
      %p48 = por %p46, %p47
      %p49 = scmp.ne.s32.totalorder %s35, %s36
      %p50 = scmp.eq.s32.totalorder %s28, 1
      %p51 = por %p49, %p50
      %p53 = scmp.ne.s32.totalorder %s36, %s52
      %p54 = scmp.eq.s32.totalorder %s28, 0
      %p55 = por %p53, %p54
      %s57 = sadd.s32 %s56, 1
      %p60 = scmp.eq.s32.totalorder %s22, 1
      %p61 = scmp.ne.s32.totalorder %s56, %s58
      %p62 = scmp.eq.s32.totalorder %s22, 0
      %p63 = por %p61, %p62
      %p64 = scmp.ne.s32.totalorder %s56, %s58
      %p65 = scmp.eq.s32.totalorder %s27, 1
      %p66 = por %p64, %p65
      %p67 = scmp.ne.s32.totalorder %s58, %s59
      %p68 = scmp.eq.s32.totalorder %s27, 0
      %p69 = por %p67, %p68
      %p70 = scmp.ne.s32.totalorder %s58, %s59
      %p71 = scmp.eq.s32.totalorder %s28, 1
      %p72 = por %p70, %p71
      %p74 = scmp.ne.s32.totalorder %s59, %s73
      %p75 = scmp.eq.s32.totalorder %s28, 0
      %p76 = por %p74, %p75
      %s78 = sadd.s32 %s77, 1
      %p81 = scmp.eq.s32.totalorder %s22, 1
      %p82 = scmp.ne.s32.totalorder %s77, %s79
      %p83 = scmp.eq.s32.totalorder %s22, 0
      %p84 = por %p82, %p83
      %p85 = scmp.ne.s32.totalorder %s77, %s79
      %p86 = scmp.eq.s32.totalorder %s27, 1
      %p87 = por %p85, %p86
      %p88 = scmp.ne.s32.totalorder %s79, %s80
      %p89 = scmp.eq.s32.totalorder %s27, 0
      %p90 = por %p88, %p89
      %p91 = scmp.ne.s32.totalorder %s79, %s80
      %p92 = scmp.eq.s32.totalorder %s28, 1
      %p93 = por %p91, %p92
      %p95 = scmp.ne.s32.totalorder %s80, %s94
      %p96 = scmp.eq.s32.totalorder %s28, 0
      %p97 = por %p95, %p96
      %s99 = sadd.s32 %s98, 1
      %p102 = scmp.eq.s32.totalorder %s22, 1
      %p103 = scmp.ne.s32.totalorder %s98, %s100
      %p104 = scmp.eq.s32.totalorder %s22, 0
      %p105 = por %p103, %p104
      %p106 = scmp.ne.s32.totalorder %s98, %s100
      %p107 = scmp.eq.s32.totalorder %s27, 1
      %p108 = por %p106, %p107
      %p109 = scmp.ne.s32.totalorder %s100, %s101
      %p110 = scmp.eq.s32.totalorder %s27, 0
      %p111 = por %p109, %p110
      %p112 = scmp.ne.s32.totalorder %s100, %s101
      %p113 = scmp.eq.s32.totalorder %s28, 1
      %p114 = por %p112, %p113
      %p116 = scmp.ne.s32.totalorder %s101, %s115
      %p117 = scmp.eq.s32.totalorder %s28, 0
      %p118 = por %p116, %p117
      %s120 = sadd.s32 %s119, 1
      %p123 = scmp.eq.s32.totalorder %s22, 1
      %p124 = scmp.ne.s32.totalorder %s119, %s121
      %p125 = scmp.eq.s32.totalorder %s22, 0
      %p126 = por %p124, %p125
      %p127 = scmp.ne.s32.totalorder %s119, %s121
      %p128 = scmp.eq.s32.totalorder %s27, 1
      %p129 = por %p127, %p128
      %p130 = scmp.ne.s32.totalorder %s121, %s122
      %p131 = scmp.eq.s32.totalorder %s27, 0
      %p132 = por %p130, %p131
      %p133 = scmp.ne.s32.totalorder %s121, %s122
      %p134 = scmp.eq.s32.totalorder %s28, 1
      %p135 = por %p133, %p134
      %p137 = scmp.ne.s32.totalorder %s122, %s136
      %p138 = scmp.eq.s32.totalorder %s28, 0
      %p139 = por %p137, %p138
      %s141 = sadd.s32 %s140, 1
      %p144 = scmp.eq.s32.totalorder %s22, 1
      %p145 = scmp.ne.s32.totalorder %s140, %s142
      %p146 = scmp.eq.s32.totalorder %s22, 0
      %p147 = por %p145, %p146
      %p148 = scmp.ne.s32.totalorder %s140, %s142
      %p149 = scmp.eq.s32.totalorder %s27, 1
      %p150 = por %p148, %p149
      %p151 = scmp.ne.s32.totalorder %s142, %s143
      %p152 = scmp.eq.s32.totalorder %s27, 0
      %p153 = por %p151, %p152
      %p154 = scmp.ne.s32.totalorder %s142, %s143
      %p155 = scmp.eq.s32.totalorder %s28, 1
      %p156 = por %p154, %p155
      %p158 = scmp.ne.s32.totalorder %s143, %s157
      %p159 = scmp.eq.s32.totalorder %s28, 0
      %p160 = por %p158, %p159
      %s162 = sadd.s32 %s161, 1
      %p165 = scmp.eq.s32.totalorder %s22, 1
      %p166 = scmp.ne.s32.totalorder %s161, %s163
      %p167 = scmp.eq.s32.totalorder %s22, 0
      %p168 = por %p166, %p167
      %p169 = scmp.ne.s32.totalorder %s161, %s163
      %p170 = scmp.eq.s32.totalorder %s27, 1
      %p171 = por %p169, %p170
      %p172 = scmp.ne.s32.totalorder %s163, %s164
      %p173 = scmp.eq.s32.totalorder %s27, 0
      %p174 = por %p172, %p173
      %p175 = scmp.ne.s32.totalorder %s163, %s164
      %p176 = scmp.eq.s32.totalorder %s28, 1
      %p177 = por %p175, %p176
      %p179 = scmp.ne.s32.totalorder %s164, %s178
      %p180 = scmp.eq.s32.totalorder %s28, 0
      %p181 = por %p179, %p180
      %s183 = sadd.s32 %s182, 1
      %p186 = scmp.eq.s32.totalorder %s22, 1
      %p187 = scmp.ne.s32.totalorder %s182, %s184
      %p188 = scmp.eq.s32.totalorder %s22, 0
      %p189 = por %p187, %p188
      %p190 = scmp.ne.s32.totalorder %s182, %s184
      %p191 = scmp.eq.s32.totalorder %s27, 1
      %p192 = por %p190, %p191
      %p193 = scmp.ne.s32.totalorder %s184, %s185
      %p194 = scmp.eq.s32.totalorder %s27, 0
      %p195 = por %p193, %p194
      %p196 = scmp.ne.s32.totalorder %s184, %s185
      %p197 = scmp.eq.s32.totalorder %s28, 1
      %p198 = por %p196, %p197
      %p200 = scmp.ne.s32.totalorder %s185, %s199
      %p201 = scmp.eq.s32.totalorder %s28, 0
      %p202 = por %p200, %p201
      %s204 = sadd.s32 %s203, 1
      %p207 = scmp.eq.s32.totalorder %s22, 1
      %p208 = scmp.ne.s32.totalorder %s203, %s205
      %p209 = scmp.eq.s32.totalorder %s22, 0
      %p210 = por %p208, %p209
      %p211 = scmp.ne.s32.totalorder %s203, %s205
      %p212 = scmp.eq.s32.totalorder %s27, 1
      %p213 = por %p211, %p212
      %p214 = scmp.ne.s32.totalorder %s205, %s206
      %p215 = scmp.eq.s32.totalorder %s27, 0
      %p216 = por %p214, %p215
      %p217 = scmp.ne.s32.totalorder %s205, %s206
      %p218 = scmp.eq.s32.totalorder %s28, 1
      %p219 = por %p217, %p218
      %p221 = scmp.ne.s32.totalorder %s206, %s220
      %p222 = scmp.eq.s32.totalorder %s28, 0
      %p223 = por %p221, %p222
      %s225 = sadd.s32 %s224, 1
      %p228 = scmp.eq.s32.totalorder %s22, 1
      %p229 = scmp.ne.s32.totalorder %s224, %s226
      %p230 = scmp.eq.s32.totalorder %s22, 0
      %p231 = por %p229, %p230
      %p232 = scmp.ne.s32.totalorder %s224, %s226
      %p233 = scmp.eq.s32.totalorder %s27, 1
      %p234 = por %p232, %p233
      %p235 = scmp.ne.s32.totalorder %s226, %s227
      %p236 = scmp.eq.s32.totalorder %s27, 0
      %p237 = por %p235, %p236
      %p238 = scmp.ne.s32.totalorder %s226, %s227
      %p239 = scmp.eq.s32.totalorder %s28, 1
      %p240 = por %p238, %p239
      %p242 = scmp.ne.s32.totalorder %s227, %s241
      %p243 = scmp.eq.s32.totalorder %s28, 0
      %p244 = por %p242, %p243
      %s246 = sadd.s32 %s245, 1
      %p249 = scmp.eq.s32.totalorder %s22, 1
      %p250 = scmp.ne.s32.totalorder %s245, %s247
      %p251 = scmp.eq.s32.totalorder %s22, 0
      %p252 = por %p250, %p251
      %p253 = scmp.ne.s32.totalorder %s245, %s247
      %p254 = scmp.eq.s32.totalorder %s27, 1
      %p255 = por %p253, %p254
      %p256 = scmp.ne.s32.totalorder %s247, %s248
      %p257 = scmp.eq.s32.totalorder %s27, 0
      %p258 = por %p256, %p257
      %p259 = scmp.ne.s32.totalorder %s247, %s248
      %p260 = scmp.eq.s32.totalorder %s28, 1
      %p261 = por %p259, %p260
      %p263 = scmp.ne.s32.totalorder %s248, %s262
      %p264 = scmp.eq.s32.totalorder %s28, 0
      %p265 = por %p263, %p264
      %s267 = sadd.s32 %s266, 1
      %p270 = scmp.eq.s32.totalorder %s22, 1
      %p271 = scmp.ne.s32.totalorder %s266, %s268
      %p272 = scmp.eq.s32.totalorder %s22, 0
      %p273 = por %p271, %p272
      %p274 = scmp.ne.s32.totalorder %s266, %s268
      %p275 = scmp.eq.s32.totalorder %s27, 1
      %p276 = por %p274, %p275
      %p277 = scmp.ne.s32.totalorder %s268, %s269
      %p278 = scmp.eq.s32.totalorder %s27, 0
      %p279 = por %p277, %p278
      %p280 = scmp.ne.s32.totalorder %s268, %s269
      %p281 = scmp.eq.s32.totalorder %s28, 1
      %p282 = por %p280, %p281
      %p284 = scmp.ne.s32.totalorder %s269, %s283
      %p285 = scmp.eq.s32.totalorder %s28, 0
      %p286 = por %p284, %p285
      %s288 = sadd.s32 %s287, 1
      %p291 = scmp.eq.s32.totalorder %s22, 1
      %p292 = scmp.ne.s32.totalorder %s287, %s289
      %p293 = scmp.eq.s32.totalorder %s22, 0
      %p294 = por %p292, %p293
      %p295 = scmp.ne.s32.totalorder %s287, %s289
      %p296 = scmp.eq.s32.totalorder %s27, 1
      %p297 = por %p295, %p296
      %p298 = scmp.ne.s32.totalorder %s289, %s290
      %p299 = scmp.eq.s32.totalorder %s27, 0
      %p300 = por %p298, %p299
      %p301 = scmp.ne.s32.totalorder %s289, %s290
      %p302 = scmp.eq.s32.totalorder %s28, 1
      %p303 = por %p301, %p302
      %p305 = scmp.ne.s32.totalorder %s290, %s304
      %p306 = scmp.eq.s32.totalorder %s28, 0
      %p307 = por %p305, %p306
      %s308 = ssub.s32 %s22, %s29
      %p309 = scmp.eq.s32.totalorder %s308, 0
      %s311 = sadd.s32 %s310, 1
      %s312 = scalar_select %p309, %s310, %s311
      %p315 = pneg %p309
      %p316 = scmp.eq.s32.totalorder %s22, 1
      %p317 = por %p315, %p316
      %p318 = scmp.ne.s32.totalorder %s310, %s313
      %p319 = scmp.eq.s32.totalorder %s22, 0
      %p320 = por %p318, %p319
      %p321 = scmp.ne.s32.totalorder %s310, %s313
      %p322 = scmp.eq.s32.totalorder %s27, 1
      %p323 = por %p321, %p322
      %p324 = scmp.ne.s32.totalorder %s313, %s314
      %p325 = scmp.eq.s32.totalorder %s27, 0
      %p326 = por %p324, %p325
      %p327 = scmp.ne.s32.totalorder %s313, %s314
      %p328 = scmp.eq.s32.totalorder %s28, 1
      %p329 = por %p327, %p328
      %p331 = scmp.ne.s32.totalorder %s314, %s330
      %p332 = scmp.eq.s32.totalorder %s28, 0
      %p333 = por %p331, %p332
      %p334 = scmp.le.s32.totalorder 1, %s22
      %p335 = scmp.lt.s32.totalorder %s22, 3
      %p336 = pnand %p334, %p335
      %p337 = pneg %p336
      // Predicated region
      $region9: #{tpu_custom_call.1} parent=5 // pred_check
        _
      $region10: #{tpu_custom_call.1} parent=5 // pred_check_branch
        %339 = sbr.rel (%p336) target = $region12
      $region11: #{tpu_custom_call.1} parent=5 // pred_region
        %s340 = ssub.s32 %s22, 1
        // Predicated region
        $region13: #{tpu_custom_call.1} parent=11 // pred_check
          %p341 = pneg %p69
        $region14: #{tpu_custom_call.1} parent=11 // pred_check_branch
          %343 = sbr.rel (%p341) target = $region16
        $region15: #{tpu_custom_call.1} parent=11 // pred_region
          _
        $region16: #{tpu_custom_call.1} parent=11 // pred_fallthru
          _
        // Predicated region
        $region17: #{tpu_custom_call.1} parent=11 // pred_check
          %p344 = pneg %p90
        $region18: #{tpu_custom_call.1} parent=11 // pred_check_branch
          %346 = sbr.rel (%p344) target = $region20
        $region19: #{tpu_custom_call.1} parent=11 // pred_region
          _
        $region20: #{tpu_custom_call.1} parent=11 // pred_fallthru
          _
        // Predicated region
        $region21: #{tpu_custom_call.1} parent=11 // pred_check
          %p347 = pneg %p111
        $region22: #{tpu_custom_call.1} parent=11 // pred_check_branch
          %349 = sbr.rel (%p347) target = $region24
        $region23: #{tpu_custom_call.1} parent=11 // pred_region
          _
        $region24: #{tpu_custom_call.1} parent=11 // pred_fallthru
          _
        // Predicated region
        $region25: #{tpu_custom_call.1} parent=11 // pred_check
          %p350 = pneg %p132
        $region26: #{tpu_custom_call.1} parent=11 // pred_check_branch
          %352 = sbr.rel (%p350) target = $region28
        $region27: #{tpu_custom_call.1} parent=11 // pred_region
          _
        $region28: #{tpu_custom_call.1} parent=11 // pred_fallthru
          _
        // Predicated region
        $region29: #{tpu_custom_call.1} parent=11 // pred_check
          %p353 = pneg %p153
        $region30: #{tpu_custom_call.1} parent=11 // pred_check_branch
          %355 = sbr.rel (%p353) target = $region32
        $region31: #{tpu_custom_call.1} parent=11 // pred_region
          _
        $region32: #{tpu_custom_call.1} parent=11 // pred_fallthru
          _
        // Predicated region
        $region33: #{tpu_custom_call.1} parent=11 // pred_check
          %p356 = pneg %p174
        $region34: #{tpu_custom_call.1} parent=11 // pred_check_branch
          %358 = sbr.rel (%p356) target = $region36
        $region35: #{tpu_custom_call.1} parent=11 // pred_region
          _
        $region36: #{tpu_custom_call.1} parent=11 // pred_fallthru
          _
        // Predicated region
        $region37: #{tpu_custom_call.1} parent=11 // pred_check
          %p359 = pneg %p195
        $region38: #{tpu_custom_call.1} parent=11 // pred_check_branch
          %361 = sbr.rel (%p359) target = $region40
        $region39: #{tpu_custom_call.1} parent=11 // pred_region
          _
        $region40: #{tpu_custom_call.1} parent=11 // pred_fallthru
          _
        // Predicated region
        $region41: #{tpu_custom_call.1} parent=11 // pred_check
          %p362 = pneg %p216
        $region42: #{tpu_custom_call.1} parent=11 // pred_check_branch
          %364 = sbr.rel (%p362) target = $region44
        $region43: #{tpu_custom_call.1} parent=11 // pred_region
          _
        $region44: #{tpu_custom_call.1} parent=11 // pred_fallthru
          _
        // Predicated region
        $region45: #{tpu_custom_call.1} parent=11 // pred_check
          %p365 = pneg %p237
        $region46: #{tpu_custom_call.1} parent=11 // pred_check_branch
          %367 = sbr.rel (%p365) target = $region48
        $region47: #{tpu_custom_call.1} parent=11 // pred_region
          _
        $region48: #{tpu_custom_call.1} parent=11 // pred_fallthru
          _
        // Predicated region
        $region49: #{tpu_custom_call.1} parent=11 // pred_check
          %p368 = pneg %p258
        $region50: #{tpu_custom_call.1} parent=11 // pred_check_branch
          %370 = sbr.rel (%p368) target = $region52
        $region51: #{tpu_custom_call.1} parent=11 // pred_region
          _
        $region52: #{tpu_custom_call.1} parent=11 // pred_fallthru
          _
        // Predicated region
        $region53: #{tpu_custom_call.1} parent=11 // pred_check
          %p371 = pneg %p279
        $region54: #{tpu_custom_call.1} parent=11 // pred_check_branch
          %373 = sbr.rel (%p371) target = $region56
        $region55: #{tpu_custom_call.1} parent=11 // pred_region
          _
        $region56: #{tpu_custom_call.1} parent=11 // pred_fallthru
          _
        // Predicated region
        $region57: #{tpu_custom_call.1} parent=11 // pred_check
          %p374 = pneg %p300
        $region58: #{tpu_custom_call.1} parent=11 // pred_check_branch
          %376 = sbr.rel (%p374) target = $region60
        $region59: #{tpu_custom_call.1} parent=11 // pred_region
          _
        $region60: #{tpu_custom_call.1} parent=11 // pred_fallthru
          _
      $region12: #{tpu_custom_call.1} parent=5 // pred_fallthru
        _
      %p377 = scmp.lt.s32.totalorder %s22, 2
      // Predicated region
      $region61: #{tpu_custom_call.1} parent=5 // pred_check
        %p378 = pneg %p377
      $region62: #{tpu_custom_call.1} parent=5 // pred_check_branch
        %380 = sbr.rel (%p378) target = $region64
      $region63: #{tpu_custom_call.1} parent=5 // pred_region
        // Predicated region
        $region65: #{tpu_custom_call.1} parent=63 // pred_check
          %p381 = pneg %p42
        $region66: #{tpu_custom_call.1} parent=63 // pred_check_branch
          %383 = sbr.rel (%p381) target = $region68
        $region67: #{tpu_custom_call.1} parent=63 // pred_region
          %p384 = scmp.lt.s32.totalorder %s22, 1
          %s385 = scalar_select %p384, %s22, 1
          %s386 = smul.addr %s385, 8
          %s387 = scalar_lea.vmem %s0, %s386
        $region68: #{tpu_custom_call.1} parent=63 // pred_fallthru
          _
      $region64: #{tpu_custom_call.1} parent=5 // pred_fallthru
        _
      %p388 = scmp.le.s32.totalorder 1, %s22
      %p389 = scmp.lt.s32.totalorder %s22, 3
      %p390 = pnand %p388, %p389
      %p391 = pneg %p390
      // Predicated region
      $region69: #{tpu_custom_call.1} parent=5 // pred_check
        _
      $region70: #{tpu_custom_call.1} parent=5 // pred_check_branch
        %393 = sbr.rel (%p390) target = $region72
      $region71: #{tpu_custom_call.1} parent=5 // pred_region
        %s394 = ssub.s32 %s22, 1
        %p395 = scmp.lt.s32.totalorder %s27, 1
        %s396 = scalar_select %p395, %s27, 1
        %s397 = smul.addr %s396, 8
        %s398 = scalar_lea.vmem %s0, %s397
        %p399 = pneg %p48
        %p400 = pneg %p45
        %p401 = pneg %p69
        %p402 = pneg %p66
        %p403 = pneg %p90
        %p404 = pneg %p87
        %p405 = pneg %p111
        %p406 = pneg %p108
        %p407 = pneg %p132
        %p408 = pneg %p129
        %p409 = pneg %p153
        %p410 = pneg %p150
        %p411 = pneg %p174
        %p412 = pneg %p171
        %p413 = pneg %p195
        %p414 = pneg %p192
        %p415 = pneg %p216
        %p416 = pneg %p213
        %p417 = pneg %p237
        %p418 = pneg %p234
        %p419 = pneg %p258
        %p420 = pneg %p255
        %p421 = pneg %p279
        %p422 = pneg %p276
        %p423 = pneg %p300
        %p424 = pneg %p297
        %p425 = pneg %p326
        %p426 = pneg %p323
        %s427 = sand.u32 %s313, 1
        %s428 = scalar_lea.sflag [#allocation3], %s427
        %s429 = sand.u32 %s313, 1
        %s430 = smul.addr %s429, 8
        %s431 = scalar_lea.vmem [#allocation2], %s430
        %p432 = scmp.lt.s32.totalorder %s27, 1
        %s433 = scalar_select %p432, %s27, 1
        %s434 = smul.addr %s433, 8
        %s435 = scalar_lea.vmem %s0, %s434
        %v437 = vld [vmem:[%s435] sm:$0xff]
        %v438 = vpack.c.bf16 %v437, %v437
        %v439 = vld [vmem:[%s1] sm:$0xf]
        %v440 = vld [vmem:[%s1 + $0x4] sm:$0xf]
        %v441 = vld [vmem:[%s1 + $0x8] sm:$0xf]
        %v442 = vld [vmem:[%s1 + $0xc] sm:$0xf]
        %v443 = vld [vmem:[%s2] sm:$0x1]
        %v445 = vlaneseq
        %v446 = vshrl.u32 %v445, 7
        %v447 = vsub.s32 0, %v446
        %v448 = vrot.slane %v443, %v447
        %v454 = vunpack.c.l.b16 %v439
        %v455 = vunpack.c.l.b16 %v440
        %v456 = vunpack.c.l.b16 %v441
        %v457 = vunpack.c.l.b16 %v442
        %v458 = vpack.c.b16 %v455, %v454
        %v459 = vpack.c.b16 %v457, %v456
        %vm462 = vcmask 261120
        %v464 = vsel %vm462, %v438, 0
        %466 = vmatprep.subr.bf16.mxu0 0
        %467 = vmatpush1.bf16.msra.mxu0 0
        %468 = vmatprep.subr.bf16.mxu0 0
        %469 = vmatpush1.bf16.msra.mxu0 0
        %470 = vmatprep.subr.bf16.mxu0 0
        %471 = vmatpush1.bf16.msra.mxu0 0
        %472 = vmatprep.subr.bf16.mxu0 0
        %473 = vmatpush1.bf16.msra.mxu0 0
        %474 = vmatprep.subr.bf16.mxu0 0
        %475 = vmatpush1.bf16.msra.mxu0 0
        %476 = vmatprep.subr.bf16.mxu0 0
        %477 = vmatpush1.bf16.msra.mxu0 0
        %478 = vmatprep.subr.bf16.mxu0 0
        %479 = vmatpush1.bf16.msra.mxu0 %v459
        %480 = vmatprep.subr.bf16.mxu0 0
        %481 = vmatpush1.bf16.msra.mxu0 %v458
        %482 = vmatprep.subr.bf16.mxu0 0
        %483 = vmatpush2.bf16.msra.mxu0 0
        %484 = vmatprep.subr.bf16.mxu0 0
        %485 = vmatpush2.bf16.msra.mxu0 0
        %486 = vmatprep.subr.bf16.mxu0 0
        %487 = vmatpush2.bf16.msra.mxu0 0
        %488 = vmatprep.subr.bf16.mxu0 0
        %489 = vmatpush2.bf16.msra.mxu0 0
        %490 = vmatprep.subr.bf16.mxu0 0
        %491 = vmatpush2.bf16.msra.mxu0 0
        %492 = vmatprep.subr.bf16.mxu0 0
        %493 = vmatpush2.bf16.msra.mxu0 0
        %494 = vmatprep.subr.bf16.mxu0 0
        %495 = vmatpush2.bf16.msra.mxu0 0
        %496 = vmatprep.subr.bf16.mxu0 0
        %497 = vmatpush2.bf16.msra.mxu0 0
        %498 = vmatprep.mubr.bf16.mxu0 0
        %499 = vmatmul.mubr.bf16.gmra.mxu0 %v464
        %v500 = vpop.f32.mrf.mxu0
        %v501 = vadd.f32 %v448, %v500
        %v502 = vpop.f32.mrf.mxu0
        %v503 = vpop.f32.mrf.mxu0
        %v504 = vpop.f32.mrf.mxu0
        %505 = vdwg.mxu0
        %507 = vrot.lane.b32.xlu0 %v501, 124
        %v508 = vpop.permute.xlu0 %507
        %510 = vrot.lane.b32.xlu0 %v501, 120
        %v511 = vpop.permute.xlu0 %510
        %513 = vrot.lane.b32.xlu0 %v501, 116
        %v514 = vpop.permute.xlu0 %513
        %516 = vrot.lane.b32.xlu0 %v501, 112
        %v517 = vpop.permute.xlu0 %516
        %519 = vrot.lane.b32.xlu0 %v501, 108
        %v520 = vpop.permute.xlu0 %519
        %522 = vrot.lane.b32.xlu0 %v501, 104
        %v523 = vpop.permute.xlu0 %522
        %525 = vrot.lane.b32.xlu0 %v501, 100
        %v526 = vpop.permute.xlu0 %525
        %v528 = vpack.c.bf16 %v501, %v501
        %v529 = vpack.c.bf16 %v508, %v508
        %v530 = vpack.c.bf16 %v511, %v511
        %v531 = vpack.c.bf16 %v514, %v514
        %v532 = vpack.c.bf16 %v517, %v517
        %v533 = vpack.c.bf16 %v520, %v520
        %v534 = vpack.c.bf16 %v523, %v523
        %v535 = vpack.c.bf16 %v526, %v526
        %537 = vrot.lane.b32.xlu0 %v528, 96
        %v538 = vpop.permute.xlu0 %537
        %vm539 = vcmask 31744
        %v541 = vsel %vm539, %v528, 0
        %v544 = vsel %vm539, %v538, 0
        %546 = vmatprep.subr.bf16.mxu0 0
        %547 = vmatpush1.bf16.xpose.msra.mxu0 0
        %548 = vmatprep.subr.bf16.mxu0 0
        %549 = vmatpush1.bf16.xpose.msra.mxu0 0
        %550 = vmatprep.subr.bf16.mxu0 0
        %551 = vmatpush1.bf16.xpose.msra.mxu0 0
        %552 = vmatprep.subr.bf16.mxu0 0
        %553 = vmatpush1.bf16.xpose.msra.mxu0 0
        %554 = vmatprep.subr.bf16.mxu0 0
        %555 = vmatpush1.bf16.xpose.msra.mxu0 0
        %556 = vmatprep.subr.bf16.mxu0 0
        %557 = vmatpush1.bf16.xpose.msra.mxu0 0
        %558 = vmatprep.subr.bf16.mxu0 0
        %559 = vmatpush1.bf16.xpose.msra.mxu0 0
        %560 = vmatprep.subr.bf16.mxu0 0
        %561 = vmatpush1.bf16.xpose.msra.mxu0 %v544
        %562 = vmatprep.subr.bf16.mxu0 0
        %563 = vmatpush2.bf16.xpose.msra.mxu0 0
        %564 = vmatprep.subr.bf16.mxu0 0
        %565 = vmatpush2.bf16.xpose.msra.mxu0 0
        %566 = vmatprep.subr.bf16.mxu0 0
        %567 = vmatpush2.bf16.xpose.msra.mxu0 0
        %568 = vmatprep.subr.bf16.mxu0 0
        %569 = vmatpush2.bf16.xpose.msra.mxu0 0
        %570 = vmatprep.subr.bf16.mxu0 0
        %571 = vmatpush2.bf16.xpose.msra.mxu0 0
        %572 = vmatprep.subr.bf16.mxu0 0
        %573 = vmatpush2.bf16.xpose.msra.mxu0 0
        %574 = vmatprep.subr.bf16.mxu0 0
        %575 = vmatpush2.bf16.xpose.msra.mxu0 0
        %576 = vmatprep.subr.bf16.mxu0 0
        %577 = vmatpush2.bf16.xpose.msra.mxu0 0
        %578 = vmatprep.mubr.bf16.mxu0 0
        %579 = vmatmul.mubr.bf16.gmra.mxu0 %v541
        %v580 = vpop.f32.mrf.mxu0
        %v581 = vadd.f32 0.0, %v580
        %v582 = vpop.f32.mrf.mxu0
        %v583 = vpop.f32.mrf.mxu0
        %v584 = vpop.f32.mrf.mxu0
        %585 = vdwg.mxu0
        %587 = vrot.lane.b32.xlu0 %v529, 96
        %v588 = vpop.permute.xlu0 %587
        %v590 = vsel %vm539, %v529, 0
        %v593 = vsel %vm539, %v588, 0
        %595 = vmatprep.subr.bf16.mxu0 0
        %596 = vmatpush1.bf16.xpose.msra.mxu0 0
        %597 = vmatprep.subr.bf16.mxu0 0
        %598 = vmatpush1.bf16.xpose.msra.mxu0 0
        %599 = vmatprep.subr.bf16.mxu0 0
        %600 = vmatpush1.bf16.xpose.msra.mxu0 0
        %601 = vmatprep.subr.bf16.mxu0 0
        %602 = vmatpush1.bf16.xpose.msra.mxu0 0
        %603 = vmatprep.subr.bf16.mxu0 0
        %604 = vmatpush1.bf16.xpose.msra.mxu0 0
        %605 = vmatprep.subr.bf16.mxu0 0
        %606 = vmatpush1.bf16.xpose.msra.mxu0 0
        %607 = vmatprep.subr.bf16.mxu0 0
        %608 = vmatpush1.bf16.xpose.msra.mxu0 0
        %609 = vmatprep.subr.bf16.mxu0 0
        %610 = vmatpush1.bf16.xpose.msra.mxu0 %v593
        %611 = vmatprep.subr.bf16.mxu0 0
        %612 = vmatpush2.bf16.xpose.msra.mxu0 0
        %613 = vmatprep.subr.bf16.mxu0 0
        %614 = vmatpush2.bf16.xpose.msra.mxu0 0
        %615 = vmatprep.subr.bf16.mxu0 0
        %616 = vmatpush2.bf16.xpose.msra.mxu0 0
        %617 = vmatprep.subr.bf16.mxu0 0
        %618 = vmatpush2.bf16.xpose.msra.mxu0 0
        %619 = vmatprep.subr.bf16.mxu0 0
        %620 = vmatpush2.bf16.xpose.msra.mxu0 0
        %621 = vmatprep.subr.bf16.mxu0 0
        %622 = vmatpush2.bf16.xpose.msra.mxu0 0
        %623 = vmatprep.subr.bf16.mxu0 0
        %624 = vmatpush2.bf16.xpose.msra.mxu0 0
        %625 = vmatprep.subr.bf16.mxu0 0
        %626 = vmatpush2.bf16.xpose.msra.mxu0 0
        %627 = vmatprep.mubr.bf16.mxu0 0
        %628 = vmatmul.mubr.bf16.gmra.mxu0 %v590
        %v629 = vpop.f32.mrf.mxu0
        %v630 = vadd.f32 0.0, %v629
        %v631 = vpop.f32.mrf.mxu0
        %v632 = vpop.f32.mrf.mxu0
        %v633 = vpop.f32.mrf.mxu0
        %634 = vdwg.mxu0
        %636 = vrot.lane.b32.xlu0 %v530, 96
        %v637 = vpop.permute.xlu0 %636
        %v639 = vsel %vm539, %v530, 0
        %v642 = vsel %vm539, %v637, 0
        %644 = vmatprep.subr.bf16.mxu0 0
        %645 = vmatpush1.bf16.xpose.msra.mxu0 0
        %646 = vmatprep.subr.bf16.mxu0 0
        %647 = vmatpush1.bf16.xpose.msra.mxu0 0
        %648 = vmatprep.subr.bf16.mxu0 0
        %649 = vmatpush1.bf16.xpose.msra.mxu0 0
        %650 = vmatprep.subr.bf16.mxu0 0
        %651 = vmatpush1.bf16.xpose.msra.mxu0 0
        %652 = vmatprep.subr.bf16.mxu0 0
        %653 = vmatpush1.bf16.xpose.msra.mxu0 0
        %654 = vmatprep.subr.bf16.mxu0 0
        %655 = vmatpush1.bf16.xpose.msra.mxu0 0
        %656 = vmatprep.subr.bf16.mxu0 0
        %657 = vmatpush1.bf16.xpose.msra.mxu0 0
        %658 = vmatprep.subr.bf16.mxu0 0
        %659 = vmatpush1.bf16.xpose.msra.mxu0 %v642
        %660 = vmatprep.subr.bf16.mxu0 0
        %661 = vmatpush2.bf16.xpose.msra.mxu0 0
        %662 = vmatprep.subr.bf16.mxu0 0
        %663 = vmatpush2.bf16.xpose.msra.mxu0 0
        %664 = vmatprep.subr.bf16.mxu0 0
        %665 = vmatpush2.bf16.xpose.msra.mxu0 0
        %666 = vmatprep.subr.bf16.mxu0 0
        %667 = vmatpush2.bf16.xpose.msra.mxu0 0
        %668 = vmatprep.subr.bf16.mxu0 0
        %669 = vmatpush2.bf16.xpose.msra.mxu0 0
        %670 = vmatprep.subr.bf16.mxu0 0
        %671 = vmatpush2.bf16.xpose.msra.mxu0 0
        %672 = vmatprep.subr.bf16.mxu0 0
        %673 = vmatpush2.bf16.xpose.msra.mxu0 0
        %674 = vmatprep.subr.bf16.mxu0 0
        %675 = vmatpush2.bf16.xpose.msra.mxu0 0
        %676 = vmatprep.mubr.bf16.mxu0 0
        %677 = vmatmul.mubr.bf16.gmra.mxu0 %v639
        %v678 = vpop.f32.mrf.mxu0
        %v679 = vadd.f32 0.0, %v678
        %v680 = vpop.f32.mrf.mxu0
        %v681 = vpop.f32.mrf.mxu0
        %v682 = vpop.f32.mrf.mxu0
        %683 = vdwg.mxu0
        %685 = vrot.lane.b32.xlu0 %v531, 96
        %v686 = vpop.permute.xlu0 %685
        %v688 = vsel %vm539, %v531, 0
        %v691 = vsel %vm539, %v686, 0
        %693 = vmatprep.subr.bf16.mxu0 0
        %694 = vmatpush1.bf16.xpose.msra.mxu0 0
        %695 = vmatprep.subr.bf16.mxu0 0
        %696 = vmatpush1.bf16.xpose.msra.mxu0 0
        %697 = vmatprep.subr.bf16.mxu0 0
        %698 = vmatpush1.bf16.xpose.msra.mxu0 0
        %699 = vmatprep.subr.bf16.mxu0 0
        %700 = vmatpush1.bf16.xpose.msra.mxu0 0
        %701 = vmatprep.subr.bf16.mxu0 0
        %702 = vmatpush1.bf16.xpose.msra.mxu0 0
        %703 = vmatprep.subr.bf16.mxu0 0
        %704 = vmatpush1.bf16.xpose.msra.mxu0 0
        %705 = vmatprep.subr.bf16.mxu0 0
        %706 = vmatpush1.bf16.xpose.msra.mxu0 0
        %707 = vmatprep.subr.bf16.mxu0 0
        %708 = vmatpush1.bf16.xpose.msra.mxu0 %v691
        %709 = vmatprep.subr.bf16.mxu0 0
        %710 = vmatpush2.bf16.xpose.msra.mxu0 0
        %711 = vmatprep.subr.bf16.mxu0 0
        %712 = vmatpush2.bf16.xpose.msra.mxu0 0
        %713 = vmatprep.subr.bf16.mxu0 0
        %714 = vmatpush2.bf16.xpose.msra.mxu0 0
        %715 = vmatprep.subr.bf16.mxu0 0
        %716 = vmatpush2.bf16.xpose.msra.mxu0 0
        %717 = vmatprep.subr.bf16.mxu0 0
        %718 = vmatpush2.bf16.xpose.msra.mxu0 0
        %719 = vmatprep.subr.bf16.mxu0 0
        %720 = vmatpush2.bf16.xpose.msra.mxu0 0
        %721 = vmatprep.subr.bf16.mxu0 0
        %722 = vmatpush2.bf16.xpose.msra.mxu0 0
        %723 = vmatprep.subr.bf16.mxu0 0
        %724 = vmatpush2.bf16.xpose.msra.mxu0 0
        %725 = vmatprep.mubr.bf16.mxu0 0
        %726 = vmatmul.mubr.bf16.gmra.mxu0 %v688
        %v727 = vpop.f32.mrf.mxu0
        %v728 = vadd.f32 0.0, %v727
        %v729 = vpop.f32.mrf.mxu0
        %v730 = vpop.f32.mrf.mxu0
        %v731 = vpop.f32.mrf.mxu0
        %732 = vdwg.mxu0
        %734 = vrot.lane.b32.xlu0 %v532, 96
        %v735 = vpop.permute.xlu0 %734
        %v737 = vsel %vm539, %v532, 0
        %v740 = vsel %vm539, %v735, 0
        %742 = vmatprep.subr.bf16.mxu0 0
        %743 = vmatpush1.bf16.xpose.msra.mxu0 0
        %744 = vmatprep.subr.bf16.mxu0 0
        %745 = vmatpush1.bf16.xpose.msra.mxu0 0
        %746 = vmatprep.subr.bf16.mxu0 0
        %747 = vmatpush1.bf16.xpose.msra.mxu0 0
        %748 = vmatprep.subr.bf16.mxu0 0
        %749 = vmatpush1.bf16.xpose.msra.mxu0 0
        %750 = vmatprep.subr.bf16.mxu0 0
        %751 = vmatpush1.bf16.xpose.msra.mxu0 0
        %752 = vmatprep.subr.bf16.mxu0 0
        %753 = vmatpush1.bf16.xpose.msra.mxu0 0
        %754 = vmatprep.subr.bf16.mxu0 0
        %755 = vmatpush1.bf16.xpose.msra.mxu0 0
        %756 = vmatprep.subr.bf16.mxu0 0
        %757 = vmatpush1.bf16.xpose.msra.mxu0 %v740
        %758 = vmatprep.subr.bf16.mxu0 0
        %759 = vmatpush2.bf16.xpose.msra.mxu0 0
        %760 = vmatprep.subr.bf16.mxu0 0
        %761 = vmatpush2.bf16.xpose.msra.mxu0 0
        %762 = vmatprep.subr.bf16.mxu0 0
        %763 = vmatpush2.bf16.xpose.msra.mxu0 0
        %764 = vmatprep.subr.bf16.mxu0 0
        %765 = vmatpush2.bf16.xpose.msra.mxu0 0
        %766 = vmatprep.subr.bf16.mxu0 0
        %767 = vmatpush2.bf16.xpose.msra.mxu0 0
        %768 = vmatprep.subr.bf16.mxu0 0
        %769 = vmatpush2.bf16.xpose.msra.mxu0 0
        %770 = vmatprep.subr.bf16.mxu0 0
        %771 = vmatpush2.bf16.xpose.msra.mxu0 0
        %772 = vmatprep.subr.bf16.mxu0 0
        %773 = vmatpush2.bf16.xpose.msra.mxu0 0
        %774 = vmatprep.mubr.bf16.mxu0 0
        %775 = vmatmul.mubr.bf16.gmra.mxu0 %v737
        %v776 = vpop.f32.mrf.mxu0
        %v777 = vadd.f32 0.0, %v776
        %v778 = vpop.f32.mrf.mxu0
        %v779 = vpop.f32.mrf.mxu0
        %v780 = vpop.f32.mrf.mxu0
        %781 = vdwg.mxu0
        %783 = vrot.lane.b32.xlu0 %v533, 96
        %v784 = vpop.permute.xlu0 %783
        %v786 = vsel %vm539, %v533, 0
        %v789 = vsel %vm539, %v784, 0
        %791 = vmatprep.subr.bf16.mxu0 0
        %792 = vmatpush1.bf16.xpose.msra.mxu0 0
        %793 = vmatprep.subr.bf16.mxu0 0
        %794 = vmatpush1.bf16.xpose.msra.mxu0 0
        %795 = vmatprep.subr.bf16.mxu0 0
        %796 = vmatpush1.bf16.xpose.msra.mxu0 0
        %797 = vmatprep.subr.bf16.mxu0 0
        %798 = vmatpush1.bf16.xpose.msra.mxu0 0
        %799 = vmatprep.subr.bf16.mxu0 0
        %800 = vmatpush1.bf16.xpose.msra.mxu0 0
        %801 = vmatprep.subr.bf16.mxu0 0
        %802 = vmatpush1.bf16.xpose.msra.mxu0 0
        %803 = vmatprep.subr.bf16.mxu0 0
        %804 = vmatpush1.bf16.xpose.msra.mxu0 0
        %805 = vmatprep.subr.bf16.mxu0 0
        %806 = vmatpush1.bf16.xpose.msra.mxu0 %v789
        %807 = vmatprep.subr.bf16.mxu0 0
        %808 = vmatpush2.bf16.xpose.msra.mxu0 0
        %809 = vmatprep.subr.bf16.mxu0 0
        %810 = vmatpush2.bf16.xpose.msra.mxu0 0
        %811 = vmatprep.subr.bf16.mxu0 0
        %812 = vmatpush2.bf16.xpose.msra.mxu0 0
        %813 = vmatprep.subr.bf16.mxu0 0
        %814 = vmatpush2.bf16.xpose.msra.mxu0 0
        %815 = vmatprep.subr.bf16.mxu0 0
        %816 = vmatpush2.bf16.xpose.msra.mxu0 0
        %817 = vmatprep.subr.bf16.mxu0 0
        %818 = vmatpush2.bf16.xpose.msra.mxu0 0
        %819 = vmatprep.subr.bf16.mxu0 0
        %820 = vmatpush2.bf16.xpose.msra.mxu0 0
        %821 = vmatprep.subr.bf16.mxu0 0
        %822 = vmatpush2.bf16.xpose.msra.mxu0 0
        %823 = vmatprep.mubr.bf16.mxu0 0
        %824 = vmatmul.mubr.bf16.gmra.mxu0 %v786
        %v825 = vpop.f32.mrf.mxu0
        %v826 = vadd.f32 0.0, %v825
        %v827 = vpop.f32.mrf.mxu0
        %v828 = vpop.f32.mrf.mxu0
        %v829 = vpop.f32.mrf.mxu0
        %830 = vdwg.mxu0
        %832 = vrot.lane.b32.xlu0 %v534, 96
        %v833 = vpop.permute.xlu0 %832
        %v835 = vsel %vm539, %v534, 0
        %v838 = vsel %vm539, %v833, 0
        %840 = vmatprep.subr.bf16.mxu0 0
        %841 = vmatpush1.bf16.xpose.msra.mxu0 0
        %842 = vmatprep.subr.bf16.mxu0 0
        %843 = vmatpush1.bf16.xpose.msra.mxu0 0
        %844 = vmatprep.subr.bf16.mxu0 0
        %845 = vmatpush1.bf16.xpose.msra.mxu0 0
        %846 = vmatprep.subr.bf16.mxu0 0
        %847 = vmatpush1.bf16.xpose.msra.mxu0 0
        %848 = vmatprep.subr.bf16.mxu0 0
        %849 = vmatpush1.bf16.xpose.msra.mxu0 0
        %850 = vmatprep.subr.bf16.mxu0 0
        %851 = vmatpush1.bf16.xpose.msra.mxu0 0
        %852 = vmatprep.subr.bf16.mxu0 0
        %853 = vmatpush1.bf16.xpose.msra.mxu0 0
        %854 = vmatprep.subr.bf16.mxu0 0
        %855 = vmatpush1.bf16.xpose.msra.mxu0 %v838
        %856 = vmatprep.subr.bf16.mxu0 0
        %857 = vmatpush2.bf16.xpose.msra.mxu0 0
        %858 = vmatprep.subr.bf16.mxu0 0
        %859 = vmatpush2.bf16.xpose.msra.mxu0 0
        %860 = vmatprep.subr.bf16.mxu0 0
        %861 = vmatpush2.bf16.xpose.msra.mxu0 0
        %862 = vmatprep.subr.bf16.mxu0 0
        %863 = vmatpush2.bf16.xpose.msra.mxu0 0
        %864 = vmatprep.subr.bf16.mxu0 0
        %865 = vmatpush2.bf16.xpose.msra.mxu0 0
        %866 = vmatprep.subr.bf16.mxu0 0
        %867 = vmatpush2.bf16.xpose.msra.mxu0 0
        %868 = vmatprep.subr.bf16.mxu0 0
        %869 = vmatpush2.bf16.xpose.msra.mxu0 0
        %870 = vmatprep.subr.bf16.mxu0 0
        %871 = vmatpush2.bf16.xpose.msra.mxu0 0
        %872 = vmatprep.mubr.bf16.mxu0 0
        %873 = vmatmul.mubr.bf16.gmra.mxu0 %v835
        %v874 = vpop.f32.mrf.mxu0
        %v875 = vadd.f32 0.0, %v874
        %v876 = vpop.f32.mrf.mxu0
        %v877 = vpop.f32.mrf.mxu0
        %v878 = vpop.f32.mrf.mxu0
        %879 = vdwg.mxu0
        %881 = vrot.lane.b32.xlu0 %v535, 96
        %v882 = vpop.permute.xlu0 %881
        %v884 = vsel %vm539, %v535, 0
        %v887 = vsel %vm539, %v882, 0
        %889 = vmatprep.subr.bf16.mxu0 0
        %890 = vmatpush1.bf16.xpose.msra.mxu0 0
        %891 = vmatprep.subr.bf16.mxu0 0
        %892 = vmatpush1.bf16.xpose.msra.mxu0 0
        %893 = vmatprep.subr.bf16.mxu0 0
        %894 = vmatpush1.bf16.xpose.msra.mxu0 0
        %895 = vmatprep.subr.bf16.mxu0 0
        %896 = vmatpush1.bf16.xpose.msra.mxu0 0
        %897 = vmatprep.subr.bf16.mxu0 0
        %898 = vmatpush1.bf16.xpose.msra.mxu0 0
        %899 = vmatprep.subr.bf16.mxu0 0
        %900 = vmatpush1.bf16.xpose.msra.mxu0 0
        %901 = vmatprep.subr.bf16.mxu0 0
        %902 = vmatpush1.bf16.xpose.msra.mxu0 0
        %903 = vmatprep.subr.bf16.mxu0 0
        %904 = vmatpush1.bf16.xpose.msra.mxu0 %v887
        %905 = vmatprep.subr.bf16.mxu0 0
        %906 = vmatpush2.bf16.xpose.msra.mxu0 0
        %907 = vmatprep.subr.bf16.mxu0 0
        %908 = vmatpush2.bf16.xpose.msra.mxu0 0
        %909 = vmatprep.subr.bf16.mxu0 0
        %910 = vmatpush2.bf16.xpose.msra.mxu0 0
        %911 = vmatprep.subr.bf16.mxu0 0
        %912 = vmatpush2.bf16.xpose.msra.mxu0 0
        %913 = vmatprep.subr.bf16.mxu0 0
        %914 = vmatpush2.bf16.xpose.msra.mxu0 0
        %915 = vmatprep.subr.bf16.mxu0 0
        %916 = vmatpush2.bf16.xpose.msra.mxu0 0
        %917 = vmatprep.subr.bf16.mxu0 0
        %918 = vmatpush2.bf16.xpose.msra.mxu0 0
        %919 = vmatprep.subr.bf16.mxu0 0
        %920 = vmatpush2.bf16.xpose.msra.mxu0 0
        %921 = vmatprep.mubr.bf16.mxu0 0
        %922 = vmatmul.mubr.bf16.gmra.mxu0 %v884
        %v923 = vpop.f32.mrf.mxu0
        %v924 = vadd.f32 0.0, %v923
        %v925 = vpop.f32.mrf.mxu0
        %v926 = vpop.f32.mrf.mxu0
        %v927 = vpop.f32.mrf.mxu0
        %928 = vdwg.mxu0
        %vm929 = vcmask 64512
        %v930 = vsel %vm929, %v581, -inf
        %931 = vmax.xlane.f32.xlu0 %v930
        %v932 = vpop.xlane.xlu0 %931
        %v933 = vsel %vm929, %v630, -inf
        %934 = vmax.xlane.f32.xlu0 %v933
        %v935 = vpop.xlane.xlu0 %934
        %v936 = vsel %vm929, %v679, -inf
        %937 = vmax.xlane.f32.xlu0 %v936
        %v938 = vpop.xlane.xlu0 %937
        %v939 = vsel %vm929, %v728, -inf
        %940 = vmax.xlane.f32.xlu0 %v939
        %v941 = vpop.xlane.xlu0 %940
        %v942 = vsel %vm929, %v777, -inf
        %943 = vmax.xlane.f32.xlu0 %v942
        %v944 = vpop.xlane.xlu0 %943
        %v945 = vsel %vm929, %v826, -inf
        %946 = vmax.xlane.f32.xlu0 %v945
        %v947 = vpop.xlane.xlu0 %946
        %v948 = vsel %vm929, %v875, -inf
        %949 = vmax.xlane.f32.xlu0 %v948
        %v950 = vpop.xlane.xlu0 %949
        %v951 = vsel %vm929, %v924, -inf
        %952 = vmax.xlane.f32.xlu0 %v951
        %v953 = vpop.xlane.xlu0 %952
        %v954 = vsub.f32 %v581, %v932
        %v955 = vsub.f32 %v630, %v935
        %v956 = vsub.f32 %v679, %v938
        %v957 = vsub.f32 %v728, %v941
        %v958 = vsub.f32 %v777, %v944
        %v959 = vsub.f32 %v826, %v947
        %v960 = vsub.f32 %v875, %v950
        %v961 = vsub.f32 %v924, %v953
        %v962 = vmul.f32 %v954, 1.442695
        %v963 = vpow.pop %v962
        %v964 = vmul.f32 %v955, 1.442695
        %v965 = vpow.pop %v964
        %v966 = vmul.f32 %v956, 1.442695
        %v967 = vpow.pop %v966
        %v968 = vmul.f32 %v957, 1.442695
        %v969 = vpow.pop %v968
        %v970 = vmul.f32 %v958, 1.442695
        %v971 = vpow.pop %v970
        %v972 = vmul.f32 %v959, 1.442695
        %v973 = vpow.pop %v972
        %v974 = vmul.f32 %v960, 1.442695
        %v975 = vpow.pop %v974
        %v976 = vmul.f32 %v961, 1.442695
        %v977 = vpow.pop %v976
        %v978 = vsel %vm929, %v963, 0.0
        %979 = vadd.xlane.f32.xlu0 %v978
        %v980 = vpop.xlane.xlu0 %979
        %v981 = vsel %vm929, %v965, 0.0
        %982 = vadd.xlane.f32.xlu0 %v981
        %v983 = vpop.xlane.xlu0 %982
        %v984 = vsel %vm929, %v967, 0.0
        %985 = vadd.xlane.f32.xlu0 %v984
        %v986 = vpop.xlane.xlu0 %985
        %v987 = vsel %vm929, %v969, 0.0
        %988 = vadd.xlane.f32.xlu0 %v987
        %v989 = vpop.xlane.xlu0 %988
        %v990 = vsel %vm929, %v971, 0.0
        %991 = vadd.xlane.f32.xlu0 %v990
        %v992 = vpop.xlane.xlu0 %991
        %v993 = vsel %vm929, %v973, 0.0
        %994 = vadd.xlane.f32.xlu0 %v993
        %v995 = vpop.xlane.xlu0 %994
        %v996 = vsel %vm929, %v975, 0.0
        %997 = vadd.xlane.f32.xlu0 %v996
        %v998 = vpop.xlane.xlu0 %997
        %v999 = vsel %vm929, %v977, 0.0
        %1000 = vadd.xlane.f32.xlu0 %v999
        %v1001 = vpop.xlane.xlu0 %1000
        %v1002 = vrcp.pop %v980
        %v1003 = vrcp.pop %v983
        %v1004 = vrcp.pop %v986
        %v1005 = vrcp.pop %v989
        %v1006 = vrcp.pop %v992
        %v1007 = vrcp.pop %v995
        %v1008 = vrcp.pop %v998
        %v1009 = vrcp.pop %v1001
        %v1010 = vmul.f32 %v963, %v1002
        %v1011 = vmul.f32 %v965, %v1003
        %v1012 = vmul.f32 %v967, %v1004
        %v1013 = vmul.f32 %v969, %v1005
        %v1014 = vmul.f32 %v971, %v1006
        %v1015 = vmul.f32 %v973, %v1007
        %v1016 = vmul.f32 %v975, %v1008
        %v1017 = vmul.f32 %v977, %v1009
        %v1018 = vpack.c.bf16 %v1010, %v1010
        %v1019 = vpack.c.bf16 %v1011, %v1011
        %v1020 = vpack.c.bf16 %v1012, %v1012
        %v1021 = vpack.c.bf16 %v1013, %v1013
        %v1022 = vpack.c.bf16 %v1014, %v1014
        %v1023 = vpack.c.bf16 %v1015, %v1015
        %v1024 = vpack.c.bf16 %v1016, %v1016
        %v1025 = vpack.c.bf16 %v1017, %v1017
        %1026 = vrot.lane.b32.xlu0 %v528, 64
        %v1027 = vpop.permute.xlu0 %1026
        %v1029 = vsel %vm929, %v1018, 0
        %vm1031 = vcmask 1043456
        %v1033 = vsel %vm1031, %v1027, 0
        %1035 = vmatprep.subr.bf16.mxu0 0
        %1036 = vmatpush1.bf16.msra.mxu0 0
        %1037 = vmatprep.subr.bf16.mxu0 0
        %1038 = vmatpush1.bf16.msra.mxu0 0
        %1039 = vmatprep.subr.bf16.mxu0 0
        %1040 = vmatpush1.bf16.msra.mxu0 0
        %1041 = vmatprep.subr.bf16.mxu0 0
        %1042 = vmatpush1.bf16.msra.mxu0 0
        %1043 = vmatprep.subr.bf16.mxu0 0
        %1044 = vmatpush1.bf16.msra.mxu0 0
        %1045 = vmatprep.subr.bf16.mxu0 0
        %1046 = vmatpush1.bf16.msra.mxu0 0
        %1047 = vmatprep.subr.bf16.mxu0 0
        %1048 = vmatpush1.bf16.msra.mxu0 0
        %1049 = vmatprep.subr.bf16.mxu0 0
        %1050 = vmatpush1.bf16.msra.mxu0 %v1033
        %1051 = vmatprep.subr.bf16.mxu0 0
        %1052 = vmatpush2.bf16.msra.mxu0 0
        %1053 = vmatprep.subr.bf16.mxu0 0
        %1054 = vmatpush2.bf16.msra.mxu0 0
        %1055 = vmatprep.subr.bf16.mxu0 0
        %1056 = vmatpush2.bf16.msra.mxu0 0
        %1057 = vmatprep.subr.bf16.mxu0 0
        %1058 = vmatpush2.bf16.msra.mxu0 0
        %1059 = vmatprep.subr.bf16.mxu0 0
        %1060 = vmatpush2.bf16.msra.mxu0 0
        %1061 = vmatprep.subr.bf16.mxu0 0
        %1062 = vmatpush2.bf16.msra.mxu0 0
        %1063 = vmatprep.subr.bf16.mxu0 0
        %1064 = vmatpush2.bf16.msra.mxu0 0
        %1065 = vmatprep.subr.bf16.mxu0 0
        %1066 = vmatpush2.bf16.msra.mxu0 0
        %1067 = vmatprep.mubr.bf16.mxu0 0
        %1068 = vmatmul.mubr.bf16.gmra.mxu0 %v1029
        %v1069 = vpop.f32.mrf.mxu0
        %v1070 = vadd.f32 0.0, %v1069
        %v1071 = vpop.f32.mrf.mxu0
        %v1072 = vpop.f32.mrf.mxu0
        %v1073 = vpop.f32.mrf.mxu0
        %1074 = vdwg.mxu0
        %1075 = vrot.lane.b32.xlu0 %v529, 64
        %v1076 = vpop.permute.xlu0 %1075
        %v1078 = vsel %vm929, %v1019, 0
        %v1081 = vsel %vm1031, %v1076, 0
        %1083 = vmatprep.subr.bf16.mxu0 0
        %1084 = vmatpush1.bf16.msra.mxu0 0
        %1085 = vmatprep.subr.bf16.mxu0 0
        %1086 = vmatpush1.bf16.msra.mxu0 0
        %1087 = vmatprep.subr.bf16.mxu0 0
        %1088 = vmatpush1.bf16.msra.mxu0 0
        %1089 = vmatprep.subr.bf16.mxu0 0
        %1090 = vmatpush1.bf16.msra.mxu0 0
        %1091 = vmatprep.subr.bf16.mxu0 0
        %1092 = vmatpush1.bf16.msra.mxu0 0
        %1093 = vmatprep.subr.bf16.mxu0 0
        %1094 = vmatpush1.bf16.msra.mxu0 0
        %1095 = vmatprep.subr.bf16.mxu0 0
        %1096 = vmatpush1.bf16.msra.mxu0 0
        %1097 = vmatprep.subr.bf16.mxu0 0
        %1098 = vmatpush1.bf16.msra.mxu0 %v1081
        %1099 = vmatprep.subr.bf16.mxu0 0
        %1100 = vmatpush2.bf16.msra.mxu0 0
        %1101 = vmatprep.subr.bf16.mxu0 0
        %1102 = vmatpush2.bf16.msra.mxu0 0
        %1103 = vmatprep.subr.bf16.mxu0 0
        %1104 = vmatpush2.bf16.msra.mxu0 0
        %1105 = vmatprep.subr.bf16.mxu0 0
        %1106 = vmatpush2.bf16.msra.mxu0 0
        %1107 = vmatprep.subr.bf16.mxu0 0
        %1108 = vmatpush2.bf16.msra.mxu0 0
        %1109 = vmatprep.subr.bf16.mxu0 0
        %1110 = vmatpush2.bf16.msra.mxu0 0
        %1111 = vmatprep.subr.bf16.mxu0 0
        %1112 = vmatpush2.bf16.msra.mxu0 0
        %1113 = vmatprep.subr.bf16.mxu0 0
        %1114 = vmatpush2.bf16.msra.mxu0 0
        %1115 = vmatprep.mubr.bf16.mxu0 0
        %1116 = vmatmul.mubr.bf16.gmra.mxu0 %v1078
        %v1117 = vpop.f32.mrf.mxu0
        %v1118 = vadd.f32 0.0, %v1117
        %v1119 = vpop.f32.mrf.mxu0
        %v1120 = vpop.f32.mrf.mxu0
        %v1121 = vpop.f32.mrf.mxu0
        %1122 = vdwg.mxu0
        %1123 = vrot.lane.b32.xlu0 %v530, 64
        %v1124 = vpop.permute.xlu0 %1123
        %v1126 = vsel %vm929, %v1020, 0
        %v1129 = vsel %vm1031, %v1124, 0
        %1131 = vmatprep.subr.bf16.mxu0 0
        %1132 = vmatpush1.bf16.msra.mxu0 0
        %1133 = vmatprep.subr.bf16.mxu0 0
        %1134 = vmatpush1.bf16.msra.mxu0 0
        %1135 = vmatprep.subr.bf16.mxu0 0
        %1136 = vmatpush1.bf16.msra.mxu0 0
        %1137 = vmatprep.subr.bf16.mxu0 0
        %1138 = vmatpush1.bf16.msra.mxu0 0
        %1139 = vmatprep.subr.bf16.mxu0 0
        %1140 = vmatpush1.bf16.msra.mxu0 0
        %1141 = vmatprep.subr.bf16.mxu0 0
        %1142 = vmatpush1.bf16.msra.mxu0 0
        %1143 = vmatprep.subr.bf16.mxu0 0
        %1144 = vmatpush1.bf16.msra.mxu0 0
        %1145 = vmatprep.subr.bf16.mxu0 0
        %1146 = vmatpush1.bf16.msra.mxu0 %v1129
        %1147 = vmatprep.subr.bf16.mxu0 0
        %1148 = vmatpush2.bf16.msra.mxu0 0
        %1149 = vmatprep.subr.bf16.mxu0 0
        %1150 = vmatpush2.bf16.msra.mxu0 0
        %1151 = vmatprep.subr.bf16.mxu0 0
        %1152 = vmatpush2.bf16.msra.mxu0 0
        %1153 = vmatprep.subr.bf16.mxu0 0
        %1154 = vmatpush2.bf16.msra.mxu0 0
        %1155 = vmatprep.subr.bf16.mxu0 0
        %1156 = vmatpush2.bf16.msra.mxu0 0
        %1157 = vmatprep.subr.bf16.mxu0 0
        %1158 = vmatpush2.bf16.msra.mxu0 0
        %1159 = vmatprep.subr.bf16.mxu0 0
        %1160 = vmatpush2.bf16.msra.mxu0 0
        %1161 = vmatprep.subr.bf16.mxu0 0
        %1162 = vmatpush2.bf16.msra.mxu0 0
        %1163 = vmatprep.mubr.bf16.mxu0 0
        %1164 = vmatmul.mubr.bf16.gmra.mxu0 %v1126
        %v1165 = vpop.f32.mrf.mxu0
        %v1166 = vadd.f32 0.0, %v1165
        %v1167 = vpop.f32.mrf.mxu0
        %v1168 = vpop.f32.mrf.mxu0
        %v1169 = vpop.f32.mrf.mxu0
        %1170 = vdwg.mxu0
        %1171 = vrot.lane.b32.xlu0 %v531, 64
        %v1172 = vpop.permute.xlu0 %1171
        %v1174 = vsel %vm929, %v1021, 0
        %v1177 = vsel %vm1031, %v1172, 0
        %1179 = vmatprep.subr.bf16.mxu0 0
        %1180 = vmatpush1.bf16.msra.mxu0 0
        %1181 = vmatprep.subr.bf16.mxu0 0
        %1182 = vmatpush1.bf16.msra.mxu0 0
        %1183 = vmatprep.subr.bf16.mxu0 0
        %1184 = vmatpush1.bf16.msra.mxu0 0
        %1185 = vmatprep.subr.bf16.mxu0 0
        %1186 = vmatpush1.bf16.msra.mxu0 0
        %1187 = vmatprep.subr.bf16.mxu0 0
        %1188 = vmatpush1.bf16.msra.mxu0 0
        %1189 = vmatprep.subr.bf16.mxu0 0
        %1190 = vmatpush1.bf16.msra.mxu0 0
        %1191 = vmatprep.subr.bf16.mxu0 0
        %1192 = vmatpush1.bf16.msra.mxu0 0
        %1193 = vmatprep.subr.bf16.mxu0 0
        %1194 = vmatpush1.bf16.msra.mxu0 %v1177
        %1195 = vmatprep.subr.bf16.mxu0 0
        %1196 = vmatpush2.bf16.msra.mxu0 0
        %1197 = vmatprep.subr.bf16.mxu0 0
        %1198 = vmatpush2.bf16.msra.mxu0 0
        %1199 = vmatprep.subr.bf16.mxu0 0
        %1200 = vmatpush2.bf16.msra.mxu0 0
        %1201 = vmatprep.subr.bf16.mxu0 0
        %1202 = vmatpush2.bf16.msra.mxu0 0
        %1203 = vmatprep.subr.bf16.mxu0 0
        %1204 = vmatpush2.bf16.msra.mxu0 0
        %1205 = vmatprep.subr.bf16.mxu0 0
        %1206 = vmatpush2.bf16.msra.mxu0 0
        %1207 = vmatprep.subr.bf16.mxu0 0
        %1208 = vmatpush2.bf16.msra.mxu0 0
        %1209 = vmatprep.subr.bf16.mxu0 0
        %1210 = vmatpush2.bf16.msra.mxu0 0
        %1211 = vmatprep.mubr.bf16.mxu0 0
        %1212 = vmatmul.mubr.bf16.gmra.mxu0 %v1174
        %v1213 = vpop.f32.mrf.mxu0
        %v1214 = vadd.f32 0.0, %v1213
        %v1215 = vpop.f32.mrf.mxu0
        %v1216 = vpop.f32.mrf.mxu0
        %v1217 = vpop.f32.mrf.mxu0
        %1218 = vdwg.mxu0
        %1219 = vrot.lane.b32.xlu0 %v532, 64
        %v1220 = vpop.permute.xlu0 %1219
        %v1222 = vsel %vm929, %v1022, 0
        %v1225 = vsel %vm1031, %v1220, 0
        %1227 = vmatprep.subr.bf16.mxu0 0
        %1228 = vmatpush1.bf16.msra.mxu0 0
        %1229 = vmatprep.subr.bf16.mxu0 0
        %1230 = vmatpush1.bf16.msra.mxu0 0
        %1231 = vmatprep.subr.bf16.mxu0 0
        %1232 = vmatpush1.bf16.msra.mxu0 0
        %1233 = vmatprep.subr.bf16.mxu0 0
        %1234 = vmatpush1.bf16.msra.mxu0 0
        %1235 = vmatprep.subr.bf16.mxu0 0
        %1236 = vmatpush1.bf16.msra.mxu0 0
        %1237 = vmatprep.subr.bf16.mxu0 0
        %1238 = vmatpush1.bf16.msra.mxu0 0
        %1239 = vmatprep.subr.bf16.mxu0 0
        %1240 = vmatpush1.bf16.msra.mxu0 0
        %1241 = vmatprep.subr.bf16.mxu0 0
        %1242 = vmatpush1.bf16.msra.mxu0 %v1225
        %1243 = vmatprep.subr.bf16.mxu0 0
        %1244 = vmatpush2.bf16.msra.mxu0 0
        %1245 = vmatprep.subr.bf16.mxu0 0
        %1246 = vmatpush2.bf16.msra.mxu0 0
        %1247 = vmatprep.subr.bf16.mxu0 0
        %1248 = vmatpush2.bf16.msra.mxu0 0
        %1249 = vmatprep.subr.bf16.mxu0 0
        %1250 = vmatpush2.bf16.msra.mxu0 0
        %1251 = vmatprep.subr.bf16.mxu0 0
        %1252 = vmatpush2.bf16.msra.mxu0 0
        %1253 = vmatprep.subr.bf16.mxu0 0
        %1254 = vmatpush2.bf16.msra.mxu0 0
        %1255 = vmatprep.subr.bf16.mxu0 0
        %1256 = vmatpush2.bf16.msra.mxu0 0
        %1257 = vmatprep.subr.bf16.mxu0 0
        %1258 = vmatpush2.bf16.msra.mxu0 0
        %1259 = vmatprep.mubr.bf16.mxu0 0
        %1260 = vmatmul.mubr.bf16.gmra.mxu0 %v1222
        %v1261 = vpop.f32.mrf.mxu0
        %v1262 = vadd.f32 0.0, %v1261
        %v1263 = vpop.f32.mrf.mxu0
        %v1264 = vpop.f32.mrf.mxu0
        %v1265 = vpop.f32.mrf.mxu0
        %1266 = vdwg.mxu0
        %1267 = vrot.lane.b32.xlu0 %v533, 64
        %v1268 = vpop.permute.xlu0 %1267
        %v1270 = vsel %vm929, %v1023, 0
        %v1273 = vsel %vm1031, %v1268, 0
        %1275 = vmatprep.subr.bf16.mxu0 0
        %1276 = vmatpush1.bf16.msra.mxu0 0
        %1277 = vmatprep.subr.bf16.mxu0 0
        %1278 = vmatpush1.bf16.msra.mxu0 0
        %1279 = vmatprep.subr.bf16.mxu0 0
        %1280 = vmatpush1.bf16.msra.mxu0 0
        %1281 = vmatprep.subr.bf16.mxu0 0
        %1282 = vmatpush1.bf16.msra.mxu0 0
        %1283 = vmatprep.subr.bf16.mxu0 0
        %1284 = vmatpush1.bf16.msra.mxu0 0
        %1285 = vmatprep.subr.bf16.mxu0 0
        %1286 = vmatpush1.bf16.msra.mxu0 0
        %1287 = vmatprep.subr.bf16.mxu0 0
        %1288 = vmatpush1.bf16.msra.mxu0 0
        %1289 = vmatprep.subr.bf16.mxu0 0
        %1290 = vmatpush1.bf16.msra.mxu0 %v1273
        %1291 = vmatprep.subr.bf16.mxu0 0
        %1292 = vmatpush2.bf16.msra.mxu0 0
        %1293 = vmatprep.subr.bf16.mxu0 0
        %1294 = vmatpush2.bf16.msra.mxu0 0
        %1295 = vmatprep.subr.bf16.mxu0 0
        %1296 = vmatpush2.bf16.msra.mxu0 0
        %1297 = vmatprep.subr.bf16.mxu0 0
        %1298 = vmatpush2.bf16.msra.mxu0 0
        %1299 = vmatprep.subr.bf16.mxu0 0
        %1300 = vmatpush2.bf16.msra.mxu0 0
        %1301 = vmatprep.subr.bf16.mxu0 0
        %1302 = vmatpush2.bf16.msra.mxu0 0
        %1303 = vmatprep.subr.bf16.mxu0 0
        %1304 = vmatpush2.bf16.msra.mxu0 0
        %1305 = vmatprep.subr.bf16.mxu0 0
        %1306 = vmatpush2.bf16.msra.mxu0 0
        %1307 = vmatprep.mubr.bf16.mxu0 0
        %1308 = vmatmul.mubr.bf16.gmra.mxu0 %v1270
        %v1309 = vpop.f32.mrf.mxu0
        %v1310 = vadd.f32 0.0, %v1309
        %v1311 = vpop.f32.mrf.mxu0
        %v1312 = vpop.f32.mrf.mxu0
        %v1313 = vpop.f32.mrf.mxu0
        %1314 = vdwg.mxu0
        %1315 = vrot.lane.b32.xlu0 %v534, 64
        %v1316 = vpop.permute.xlu0 %1315
        %v1318 = vsel %vm929, %v1024, 0
        %v1321 = vsel %vm1031, %v1316, 0
        %1323 = vmatprep.subr.bf16.mxu0 0
        %1324 = vmatpush1.bf16.msra.mxu0 0
        %1325 = vmatprep.subr.bf16.mxu0 0
        %1326 = vmatpush1.bf16.msra.mxu0 0
        %1327 = vmatprep.subr.bf16.mxu0 0
        %1328 = vmatpush1.bf16.msra.mxu0 0
        %1329 = vmatprep.subr.bf16.mxu0 0
        %1330 = vmatpush1.bf16.msra.mxu0 0
        %1331 = vmatprep.subr.bf16.mxu0 0
        %1332 = vmatpush1.bf16.msra.mxu0 0
        %1333 = vmatprep.subr.bf16.mxu0 0
        %1334 = vmatpush1.bf16.msra.mxu0 0
        %1335 = vmatprep.subr.bf16.mxu0 0
        %1336 = vmatpush1.bf16.msra.mxu0 0
        %1337 = vmatprep.subr.bf16.mxu0 0
        %1338 = vmatpush1.bf16.msra.mxu0 %v1321
        %1339 = vmatprep.subr.bf16.mxu0 0
        %1340 = vmatpush2.bf16.msra.mxu0 0
        %1341 = vmatprep.subr.bf16.mxu0 0
        %1342 = vmatpush2.bf16.msra.mxu0 0
        %1343 = vmatprep.subr.bf16.mxu0 0
        %1344 = vmatpush2.bf16.msra.mxu0 0
        %1345 = vmatprep.subr.bf16.mxu0 0
        %1346 = vmatpush2.bf16.msra.mxu0 0
        %1347 = vmatprep.subr.bf16.mxu0 0
        %1348 = vmatpush2.bf16.msra.mxu0 0
        %1349 = vmatprep.subr.bf16.mxu0 0
        %1350 = vmatpush2.bf16.msra.mxu0 0
        %1351 = vmatprep.subr.bf16.mxu0 0
        %1352 = vmatpush2.bf16.msra.mxu0 0
        %1353 = vmatprep.subr.bf16.mxu0 0
        %1354 = vmatpush2.bf16.msra.mxu0 0
        %1355 = vmatprep.mubr.bf16.mxu0 0
        %1356 = vmatmul.mubr.bf16.gmra.mxu0 %v1318
        %v1357 = vpop.f32.mrf.mxu0
        %v1358 = vadd.f32 0.0, %v1357
        %v1359 = vpop.f32.mrf.mxu0
        %v1360 = vpop.f32.mrf.mxu0
        %v1361 = vpop.f32.mrf.mxu0
        %1362 = vdwg.mxu0
        %1363 = vrot.lane.b32.xlu0 %v535, 64
        %v1364 = vpop.permute.xlu0 %1363
        %v1366 = vsel %vm929, %v1025, 0
        %v1369 = vsel %vm1031, %v1364, 0
        %1371 = vmatprep.subr.bf16.mxu0 0
        %1372 = vmatpush1.bf16.msra.mxu0 0
        %1373 = vmatprep.subr.bf16.mxu0 0
        %1374 = vmatpush1.bf16.msra.mxu0 0
        %1375 = vmatprep.subr.bf16.mxu0 0
        %1376 = vmatpush1.bf16.msra.mxu0 0
        %1377 = vmatprep.subr.bf16.mxu0 0
        %1378 = vmatpush1.bf16.msra.mxu0 0
        %1379 = vmatprep.subr.bf16.mxu0 0
        %1380 = vmatpush1.bf16.msra.mxu0 0
        %1381 = vmatprep.subr.bf16.mxu0 0
        %1382 = vmatpush1.bf16.msra.mxu0 0
        %1383 = vmatprep.subr.bf16.mxu0 0
        %1384 = vmatpush1.bf16.msra.mxu0 0
        %1385 = vmatprep.subr.bf16.mxu0 0
        %1386 = vmatpush1.bf16.msra.mxu0 %v1369
        %1387 = vmatprep.subr.bf16.mxu0 0
        %1388 = vmatpush2.bf16.msra.mxu0 0
        %1389 = vmatprep.subr.bf16.mxu0 0
        %1390 = vmatpush2.bf16.msra.mxu0 0
        %1391 = vmatprep.subr.bf16.mxu0 0
        %1392 = vmatpush2.bf16.msra.mxu0 0
        %1393 = vmatprep.subr.bf16.mxu0 0
        %1394 = vmatpush2.bf16.msra.mxu0 0
        %1395 = vmatprep.subr.bf16.mxu0 0
        %1396 = vmatpush2.bf16.msra.mxu0 0
        %1397 = vmatprep.subr.bf16.mxu0 0
        %1398 = vmatpush2.bf16.msra.mxu0 0
        %1399 = vmatprep.subr.bf16.mxu0 0
        %1400 = vmatpush2.bf16.msra.mxu0 0
        %1401 = vmatprep.subr.bf16.mxu0 0
        %1402 = vmatpush2.bf16.msra.mxu0 0
        %1403 = vmatprep.mubr.bf16.mxu0 0
        %1404 = vmatmul.mubr.bf16.gmra.mxu0 %v1366
        %v1405 = vpop.f32.mrf.mxu0
        %v1406 = vadd.f32 0.0, %v1405
        %v1407 = vpop.f32.mrf.mxu0
        %v1408 = vpop.f32.mrf.mxu0
        %v1409 = vpop.f32.mrf.mxu0
        %1410 = vdwg.mxu0
        %1412 = vrot.lane.b32.xlu0 %v1118, 4
        %v1413 = vpop.permute.xlu0 %1412
        %1416 = vrot.lane.b32.xlu0 %v1166, 8
        %v1417 = vpop.permute.xlu0 %1416
        %1420 = vrot.lane.b32.xlu0 %v1214, 12
        %v1421 = vpop.permute.xlu0 %1420
        %1424 = vrot.lane.b32.xlu0 %v1262, 16
        %v1425 = vpop.permute.xlu0 %1424
        %1428 = vrot.lane.b32.xlu0 %v1310, 20
        %v1429 = vpop.permute.xlu0 %1428
        %1432 = vrot.lane.b32.xlu0 %v1358, 24
        %v1433 = vpop.permute.xlu0 %1432
        %1436 = vrot.lane.b32.xlu0 %v1406, 28
        %v1437 = vpop.permute.xlu0 %1436
        %v1439 = vsel %vm539, %v1070, %v1413
        %v1440 = vsel %vm929, %v1439, %v1417
        %vm1441 = vcmask 97280
        %v1442 = vsel %vm1441, %v1440, %v1421
        %vm1443 = vcmask 130048
        %v1444 = vsel %vm1443, %v1442, %v1425
        %vm1445 = vcmask 162816
        %v1446 = vsel %vm1445, %v1444, %v1429
        %vm1447 = vcmask 195584
        %v1448 = vsel %vm1447, %v1446, %v1433
        %vm1449 = vcmask 228352
        %v1450 = vsel %vm1449, %v1448, %v1437
        %v1451 = vpack.c.bf16 %v1450, %v1450
        %v1452 = vld [vmem:[%s3] sm:$0xf]
        %v1453 = vld [vmem:[%s3 + $0x4] sm:$0xf]
        %v1454 = vld [vmem:[%s3 + $0x8] sm:$0xf]
        %v1455 = vld [vmem:[%s3 + $0xc] sm:$0xf]
        %v1456 = vld [vmem:[%s4] sm:$0x1]
        %v1458 = vlaneseq
        %v1459 = vshrl.u32 %v1458, 7
        %v1460 = vsub.s32 0, %v1459
        %v1461 = vrot.slane %v1456, %v1460
        %v1467 = vunpack.c.l.b16 %v1452
        %v1468 = vunpack.c.l.b16 %v1453
        %v1469 = vunpack.c.l.b16 %v1454
        %v1470 = vunpack.c.l.b16 %v1455
        %v1471 = vpack.c.b16 %v1468, %v1467
        %v1472 = vpack.c.b16 %v1470, %v1469
        %v1476 = vsel %vm462, %v1451, 0
        %1478 = vmatprep.subr.bf16.mxu0 0
        %1479 = vmatpush1.bf16.msra.mxu0 0
        %1480 = vmatprep.subr.bf16.mxu0 0
        %1481 = vmatpush1.bf16.msra.mxu0 0
        %1482 = vmatprep.subr.bf16.mxu0 0
        %1483 = vmatpush1.bf16.msra.mxu0 0
        %1484 = vmatprep.subr.bf16.mxu0 0
        %1485 = vmatpush1.bf16.msra.mxu0 0
        %1486 = vmatprep.subr.bf16.mxu0 0
        %1487 = vmatpush1.bf16.msra.mxu0 0
        %1488 = vmatprep.subr.bf16.mxu0 0
        %1489 = vmatpush1.bf16.msra.mxu0 0
        %1490 = vmatprep.subr.bf16.mxu0 0
        %1491 = vmatpush1.bf16.msra.mxu0 %v1472
        %1492 = vmatprep.subr.bf16.mxu0 0
        %1493 = vmatpush1.bf16.msra.mxu0 %v1471
        %1494 = vmatprep.subr.bf16.mxu0 0
        %1495 = vmatpush2.bf16.msra.mxu0 0
        %1496 = vmatprep.subr.bf16.mxu0 0
        %1497 = vmatpush2.bf16.msra.mxu0 0
        %1498 = vmatprep.subr.bf16.mxu0 0
        %1499 = vmatpush2.bf16.msra.mxu0 0
        %1500 = vmatprep.subr.bf16.mxu0 0
        %1501 = vmatpush2.bf16.msra.mxu0 0
        %1502 = vmatprep.subr.bf16.mxu0 0
        %1503 = vmatpush2.bf16.msra.mxu0 0
        %1504 = vmatprep.subr.bf16.mxu0 0
        %1505 = vmatpush2.bf16.msra.mxu0 0
        %1506 = vmatprep.subr.bf16.mxu0 0
        %1507 = vmatpush2.bf16.msra.mxu0 0
        %1508 = vmatprep.subr.bf16.mxu0 0
        %1509 = vmatpush2.bf16.msra.mxu0 0
        %1510 = vmatprep.mubr.bf16.mxu0 0
        %1511 = vmatmul.mubr.bf16.gmra.mxu0 %v1476
        %v1512 = vpop.f32.mrf.mxu0
        %v1513 = vadd.f32 %v1461, %v1512
        %v1514 = vpop.f32.mrf.mxu0
        %v1515 = vpop.f32.mrf.mxu0
        %v1516 = vpop.f32.mrf.mxu0
        %1517 = vdwg.mxu0
        %v1518 = vadd.f32 %v437, %v1513
        %v1519 = vld [vmem:[%s5] sm:$0x1]
        %v1520 = vld [vmem:[%s6] sm:$0x1]
        %v1521 = vsel %vm462, %v1518, 0.0
        %1522 = vadd.xlane.f32.xlu0 %v1521
        %v1523 = vpop.xlane.xlu0 %1522
        %v1524 = vrcp.pop 32.0
        %v1525 = vmul.f32 %v1523, %v1524
        %v1526 = vsub.f32 %v1518, %v1525
        %v1527 = vmul.f32 %v1526, %v1526
        %v1528 = vsel %vm462, %v1527, 0.0
        %1529 = vadd.xlane.f32.xlu0 %v1528
        %v1530 = vpop.xlane.xlu0 %1529
        %v1531 = vmul.f32 %v1530, %v1524
        %v1532 = vadd.f32 %v1531, 1e-05
        %v1533 = vrsqrt.pop %v1532
        %v1534 = vmul.f32 %v1526, %v1533
        %v1536 = vlaneseq
        %v1537 = vshrl.u32 %v1536, 7
        %v1538 = vsub.s32 0, %v1537
        %v1539 = vrot.slane %v1519, %v1538
        %v1541 = vmul.f32 %v1534, %v1539
        %v1543 = vlaneseq
        %v1544 = vshrl.u32 %v1543, 7
        %v1545 = vsub.s32 0, %v1544
        %v1546 = vrot.slane %v1520, %v1545
        %v1548 = vadd.f32 %v1541, %v1546
        %v1549 = vpack.c.bf16 %v1548, %v1548
        %v1550 = vld [vmem:[%s7] sm:$0xf]
        %v1551 = vld [vmem:[%s7 + $0x4] sm:$0xf]
        %v1552 = vld [vmem:[%s7 + $0x8] sm:$0xf]
        %v1553 = vld [vmem:[%s7 + $0xc] sm:$0xf]
        %v1554 = vld [vmem:[%s8] sm:$0x1]
        %v1556 = vlaneseq
        %v1557 = vshrl.u32 %v1556, 7
        %v1558 = vsub.s32 0, %v1557
        %v1559 = vrot.slane %v1554, %v1558
        %v1565 = vunpack.c.l.b16 %v1550
        %v1566 = vunpack.c.l.b16 %v1551
        %v1567 = vunpack.c.l.b16 %v1552
        %v1568 = vunpack.c.l.b16 %v1553
        %v1569 = vpack.c.b16 %v1566, %v1565
        %v1570 = vpack.c.b16 %v1568, %v1567
        %v1574 = vsel %vm462, %v1549, 0
        %1576 = vmatprep.subr.bf16.mxu0 0
        %1577 = vmatpush1.bf16.msra.mxu0 0
        %1578 = vmatprep.subr.bf16.mxu0 0
        %1579 = vmatpush1.bf16.msra.mxu0 0
        %1580 = vmatprep.subr.bf16.mxu0 0
        %1581 = vmatpush1.bf16.msra.mxu0 0
        %1582 = vmatprep.subr.bf16.mxu0 0
        %1583 = vmatpush1.bf16.msra.mxu0 0
        %1584 = vmatprep.subr.bf16.mxu0 0
        %1585 = vmatpush1.bf16.msra.mxu0 0
        %1586 = vmatprep.subr.bf16.mxu0 0
        %1587 = vmatpush1.bf16.msra.mxu0 0
        %1588 = vmatprep.subr.bf16.mxu0 0
        %1589 = vmatpush1.bf16.msra.mxu0 %v1570
        %1590 = vmatprep.subr.bf16.mxu0 0
        %1591 = vmatpush1.bf16.msra.mxu0 %v1569
        %1592 = vmatprep.subr.bf16.mxu0 0
        %1593 = vmatpush2.bf16.msra.mxu0 0
        %1594 = vmatprep.subr.bf16.mxu0 0
        %1595 = vmatpush2.bf16.msra.mxu0 0
        %1596 = vmatprep.subr.bf16.mxu0 0
        %1597 = vmatpush2.bf16.msra.mxu0 0
        %1598 = vmatprep.subr.bf16.mxu0 0
        %1599 = vmatpush2.bf16.msra.mxu0 0
        %1600 = vmatprep.subr.bf16.mxu0 0
        %1601 = vmatpush2.bf16.msra.mxu0 0
        %1602 = vmatprep.subr.bf16.mxu0 0
        %1603 = vmatpush2.bf16.msra.mxu0 0
        %1604 = vmatprep.subr.bf16.mxu0 0
        %1605 = vmatpush2.bf16.msra.mxu0 0
        %1606 = vmatprep.subr.bf16.mxu0 0
        %1607 = vmatpush2.bf16.msra.mxu0 0
        %1608 = vmatprep.mubr.bf16.mxu0 0
        %1609 = vmatmul.mubr.bf16.gmra.mxu0 %v1574
        %v1610 = vpop.f32.mrf.mxu0
        %v1611 = vadd.f32 %v1559, %v1610
        %v1612 = vpop.f32.mrf.mxu0
        %v1613 = vpop.f32.mrf.mxu0
        %v1614 = vpop.f32.mrf.mxu0
        %1615 = vdwg.mxu0
        %v1616 = vmul.f32 %v1611, 0.5
        %v1617 = vmul.f32 %v1611, 0.70710677
        %v1618 = verf.f32.pop %v1617
        %v1619 = vadd.f32 %v1618, 1.0
        %v1620 = vmul.f32 %v1616, %v1619
        %v1621 = vpack.c.bf16 %v1620, %v1620
        %v1622 = vld [vmem:[%s9] sm:$0xf]
        %v1623 = vld [vmem:[%s9 + $0x4] sm:$0xf]
        %v1624 = vld [vmem:[%s9 + $0x8] sm:$0xf]
        %v1625 = vld [vmem:[%s9 + $0xc] sm:$0xf]
        %v1626 = vld [vmem:[%s9 + $0x10] sm:$0xf]
        %v1627 = vld [vmem:[%s9 + $0x14] sm:$0xf]
        %v1628 = vld [vmem:[%s9 + $0x18] sm:$0xf]
        %v1629 = vld [vmem:[%s9 + $0x1c] sm:$0xf]
        %v1630 = vld [vmem:[%s9 + $0x20] sm:$0xf]
        %v1631 = vld [vmem:[%s9 + $0x24] sm:$0xf]
        %v1632 = vld [vmem:[%s9 + $0x28] sm:$0xf]
        %v1633 = vld [vmem:[%s9 + $0x2c] sm:$0xf]
        %v1634 = vld [vmem:[%s9 + $0x30] sm:$0xf]
        %v1635 = vld [vmem:[%s9 + $0x34] sm:$0xf]
        %v1636 = vld [vmem:[%s9 + $0x38] sm:$0xf]
        %v1637 = vld [vmem:[%s9 + $0x3c] sm:$0xf]
        %v1638 = vld [vmem:[%s10] sm:$0x1]
        %v1640 = vlaneseq
        %v1641 = vshrl.u32 %v1640, 7
        %v1642 = vsub.s32 0, %v1641
        %v1643 = vrot.slane %v1638, %v1642
        %v1661 = vunpack.c.l.b16 %v1622
        %v1662 = vunpack.c.l.b16 %v1623
        %v1663 = vunpack.c.l.b16 %v1624
        %v1664 = vunpack.c.l.b16 %v1625
        %v1665 = vunpack.c.l.b16 %v1626
        %v1666 = vunpack.c.l.b16 %v1627
        %v1667 = vunpack.c.l.b16 %v1628
        %v1668 = vunpack.c.l.b16 %v1629
        %v1669 = vunpack.c.l.b16 %v1630
        %v1670 = vunpack.c.l.b16 %v1631
        %v1671 = vunpack.c.l.b16 %v1632
        %v1672 = vunpack.c.l.b16 %v1633
        %v1673 = vunpack.c.l.b16 %v1634
        %v1674 = vunpack.c.l.b16 %v1635
        %v1675 = vunpack.c.l.b16 %v1636
        %v1676 = vunpack.c.l.b16 %v1637
        %v1677 = vpack.c.b16 %v1662, %v1661
        %v1678 = vpack.c.b16 %v1664, %v1663
        %v1679 = vpack.c.b16 %v1666, %v1665
        %v1680 = vpack.c.b16 %v1668, %v1667
        %v1681 = vpack.c.b16 %v1670, %v1669
        %v1682 = vpack.c.b16 %v1672, %v1671
        %v1683 = vpack.c.b16 %v1674, %v1673
        %v1684 = vpack.c.b16 %v1676, %v1675
        %1693 = vmatprep.subr.bf16.mxu0 0
        %1694 = vmatpush1.bf16.msra.mxu0 %v1684
        %1695 = vmatprep.subr.bf16.mxu0 0
        %1696 = vmatpush1.bf16.msra.mxu0 %v1683
        %1697 = vmatprep.subr.bf16.mxu0 0
        %1698 = vmatpush1.bf16.msra.mxu0 %v1682
        %1699 = vmatprep.subr.bf16.mxu0 0
        %1700 = vmatpush1.bf16.msra.mxu0 %v1681
        %1701 = vmatprep.subr.bf16.mxu0 0
        %1702 = vmatpush1.bf16.msra.mxu0 %v1680
        %1703 = vmatprep.subr.bf16.mxu0 0
        %1704 = vmatpush1.bf16.msra.mxu0 %v1679
        %1705 = vmatprep.subr.bf16.mxu0 0
        %1706 = vmatpush1.bf16.msra.mxu0 %v1678
        %1707 = vmatprep.subr.bf16.mxu0 0
        %1708 = vmatpush1.bf16.msra.mxu0 %v1677
        %1709 = vmatprep.subr.bf16.mxu0 0
        %1710 = vmatpush2.bf16.msra.mxu0 0
        %1711 = vmatprep.subr.bf16.mxu0 0
        %1712 = vmatpush2.bf16.msra.mxu0 0
        %1713 = vmatprep.subr.bf16.mxu0 0
        %1714 = vmatpush2.bf16.msra.mxu0 0
        %1715 = vmatprep.subr.bf16.mxu0 0
        %1716 = vmatpush2.bf16.msra.mxu0 0
        %1717 = vmatprep.subr.bf16.mxu0 0
        %1718 = vmatpush2.bf16.msra.mxu0 0
        %1719 = vmatprep.subr.bf16.mxu0 0
        %1720 = vmatpush2.bf16.msra.mxu0 0
        %1721 = vmatprep.subr.bf16.mxu0 0
        %1722 = vmatpush2.bf16.msra.mxu0 0
        %1723 = vmatprep.subr.bf16.mxu0 0
        %1724 = vmatpush2.bf16.msra.mxu0 0
        %1725 = vmatprep.mubr.bf16.mxu0 0
        %1726 = vmatmul.mubr.bf16.gmra.mxu0 %v1621
        %v1727 = vpop.f32.mrf.mxu0
        %v1728 = vadd.f32 %v1643, %v1727
        %v1729 = vpop.f32.mrf.mxu0
        %v1730 = vpop.f32.mrf.mxu0
        %v1731 = vpop.f32.mrf.mxu0
        %1732 = vdwg.mxu0
        %v1733 = vadd.f32 %v1548, %v1728
        %v1734 = vld [vmem:[%s11] sm:$0x1]
        %v1735 = vld [vmem:[%s12] sm:$0x1]
        %v1736 = vsel %vm462, %v1733, 0.0
        %1737 = vadd.xlane.f32.xlu0 %v1736
        %v1738 = vpop.xlane.xlu0 %1737
        %v1739 = vmul.f32 %v1738, %v1524
        %v1740 = vsub.f32 %v1733, %v1739
        %v1741 = vmul.f32 %v1740, %v1740
        %v1742 = vsel %vm462, %v1741, 0.0
        %1743 = vadd.xlane.f32.xlu0 %v1742
        %v1744 = vpop.xlane.xlu0 %1743
        %v1745 = vmul.f32 %v1744, %v1524
        %v1746 = vadd.f32 %v1745, 1e-05
        %v1747 = vrsqrt.pop %v1746
        %v1748 = vmul.f32 %v1740, %v1747
        %v1750 = vlaneseq
        %v1751 = vshrl.u32 %v1750, 7
        %v1752 = vsub.s32 0, %v1751
        %v1753 = vrot.slane %v1734, %v1752
        %v1755 = vmul.f32 %v1748, %v1753
        %v1757 = vlaneseq
        %v1758 = vshrl.u32 %v1757, 7
        %v1759 = vsub.s32 0, %v1758
        %v1760 = vrot.slane %v1735, %v1759
        %v1762 = vadd.f32 %v1755, %v1760
        %1763 = vst.msk [vmem:[%s431] sm:$0xff] %vm462, %v1762
        %s1764 = sand.u32 %s313, 1
        %s1765 = scalar_lea.sflag [#allocation3], %s1764
        %s1766 = sand.u32 %s313, 1
        %s1767 = smul.addr %s1766, 8
        %s1768 = scalar_lea.vmem [#allocation2], %s1767
        // Predicated region
        $region73: #{tpu_custom_call.1} parent=71 // pred_check
          %p1769 = pneg %p323
        $region74: #{tpu_custom_call.1} parent=71 // pred_check_branch
          %1771 = sbr.rel (%p1769) target = $region76
        $region75: #{tpu_custom_call.1} parent=71 // pred_region
          %s1773 = ssub.s32 128, 128
          %1774 = vsyncadd %s1765, %s1773
          %s1775 = smul.addr %s27, 128
          %s1776 = scalar_lea.hbm %s13, %s1775
          %s1778 = sshll.u32 %s1768, 4
          %s1779 = int_to_ptr.vmem [resolvable:$true] %s1778
          %1781 = dma.vmem_to_hbm [thread:$0]  %s1779, 128, %s1776, %s1765
        $region76: #{tpu_custom_call.1} parent=71 // pred_fallthru
          _
      $region72: #{tpu_custom_call.1} parent=5 // pred_fallthru
        _
      %p1782 = scmp.le.s32.totalorder 2, %s22
      // Predicated region
      $region77: #{tpu_custom_call.1} parent=5 // pred_check
        %p1783 = pneg %p1782
      $region78: #{tpu_custom_call.1} parent=5 // pred_check_branch
        %1785 = sbr.rel (%p1783) target = $region80
      $region79: #{tpu_custom_call.1} parent=5 // pred_region
        %s1786 = ssub.s32 %s22, 2
        // Predicated region
        $region81: #{tpu_custom_call.1} parent=79 // pred_check
          %p1787 = pneg %p329
        $region82: #{tpu_custom_call.1} parent=79 // pred_check_branch
          %1789 = sbr.rel (%p1787) target = $region84
        $region83: #{tpu_custom_call.1} parent=79 // pred_region
          %s1790 = sand.u32 %s314, 1
          %s1791 = scalar_lea.sflag [#allocation3], %s1790
          %s1792 = sand.u32 %s314, 1
          %s1793 = smul.addr %s1792, 8
          %s1794 = scalar_lea.vmem [#allocation2], %s1793
          %1795 = dma.done %s1791, 128
        $region84: #{tpu_custom_call.1} parent=79 // pred_fallthru
          _
      $region80: #{tpu_custom_call.1} parent=5 // pred_fallthru
        _
    $region6: #{tpu_custom_call.1} parent=1 // loop_footer
      %s26 = sadd.s32 1, %s22
    $region7: #{tpu_custom_call.1} parent=1 // loop_footer_branch
      %21 = sbr.rel target = $region3
    $region8: #{tpu_custom_call.1} parent=1 // loop_exit
      _
    %1796 = vsyncpa [#allocation3], 1
    %s1797 = scalar_lea.sflag [#allocation3], 1
    %1798 = vsyncpa %s1797, 1

</llo_original>
